<compile_context>
chip_gen: v5e
topology: v5e:2x2
jax: 0.10.0
libtpu: 0.0.40
codegen_flags: <defaults>
</compile_context>

<pallas_src>
import numpy as np
import jax
import jax.numpy as jnp
from jax.experimental import pallas as pl
from jax.experimental.pallas import tpu as pltpu

# ----------------------------- configuration -----------------------------
B = 2            # batch
SEQ_LEN = 8      # t
PRED_LEN = 4     # pred_len
D_MODEL = 32     # d_model
NHEAD = 4        # nhead
DH = D_MODEL // NHEAD
C_OUT = 4        # c_out
K = 2            # top-k fourier frequencies
DFF = 4 * D_MODEL
LN_EPS = 1e-5
T_TOT = SEQ_LEN + PRED_LEN
BT = B * SEQ_LEN
BTT = B * T_TOT
OUT_LANES = 128

# candidate rfft bins kept by FourierLayer (low_freq=1; Nyquist dropped when T even)
NFREQ = SEQ_LEN // 2 - 1 if SEQ_LEN % 2 == 0 else (SEQ_LEN - 1) // 2
assert 0 < K <= NFREQ
F_HALF = ((NFREQ * B + 7) // 8) * 8          # padded rows per (cos / sin) half of the spectrum
F_ROWS = 2 * F_HALF

# pltpu.roll(+1, axis=0) wrap/cross-batch contamination lands exactly on rows r % SEQ_LEN == 0,
# which the in-kernel `is_first` mask overwrites.  Guard the folding invariant loudly.
assert BT == B * SEQ_LEN and PRED_LEN >= 1
assert 2 * C_OUT * BT <= OUT_LANES and NHEAD * BT <= OUT_LANES
assert BT + F_ROWS <= OUT_LANES and D_MODEL + 2 * C_OUT <= OUT_LANES
assert DFF <= OUT_LANES and 3 * D_MODEL + C_OUT <= OUT_LANES
assert B * (SEQ_LEN + 1) <= BTT

# ------------------- f32 constant slab layout (rows x 128 lanes) -------------------
R_LAC = 0                                     # (BT, 2*C_OUT*BT)  level ES: [L_cat | A_cat]
R_LGC = R_LAC + BT                            # (BT, NHEAD*BT)    growth ES: L_cat
R_MASK = R_LGC + BT                           # maskg (NHEAD*BT, D) | maskl (C_OUT*BT, C) @ lane D
R_INIT = R_MASK + max(NHEAD * BT, C_OUT * BT)  # init_g (BT, D) | init_l (BT, C) @ lane D
R_DFTE = R_INIT + BT                          # DFT (F_ROWS, BT) | trim extrap (BT, F_ROWS) @ lane BT
R_EFULL = R_DFTE + max(F_ROWS, BT)            # full extrap basis (BTT, F_ROWS)
R_VEC = R_EFULL + BTT                         # 8 rows of (1, D) vectors; row 0 lanes D:D+2C = [bg|bs]
P_ROWS = ((R_VEC + 8 + 7) // 8) * 8
V_BIN, V_Z0, V_BOUT, V_G0, V_N1W, V_N1B, V_N2W, V_N2B = range(8)

# ------------------- bf16 weight slab layout (rows x 128 lanes) -------------------
RW_W1 = 0                                     # (D_MODEL, DFF)
RW_W2 = RW_W1 + D_MODEL                       # (DFF, D_MODEL)
RW_IO = RW_W2 + DFF                           # in_proj.T (D, D) | out_proj.T (D, D) @ lane D
RW_WGS = RW_IO + D_MODEL                      # block-diag [growth_pred.T | season_pred.T] (2D, 2C)
W_ROWS = ((RW_WGS + 2 * D_MODEL + 7) // 8) * 8


# ----------------------------- kernel helpers -----------------------------
def _layernorm(x, w, b):
    mu = jnp.mean(x, axis=-1, keepdims=True)
    xc = x - mu
    var = jnp.mean(xc * xc, axis=-1, keepdims=True)
    return xc * jax.lax.rsqrt(var + LN_EPS) * w + b


# ----------------------------- fused kernel -----------------------------
def _ets_fused_kernel(res_ref, lvl_ref, p_ref, w_ref, out_ref):
    f32 = jnp.float32
    bf16 = jnp.bfloat16

    x_in = res_ref[...]                                            # (BT, D) f32
    lvl = lvl_ref[...]                                             # (BT, C) f32

    # ---- constant views out of the two packed slabs (static slices, VMEM-local loads) ----
    lac = p_ref[R_LAC:R_LAC + BT, 0:2 * C_OUT * BT]
    lgc = p_ref[R_LGC:R_LGC + BT, 0:NHEAD * BT]
    maskg = p_ref[R_MASK:R_MASK + NHEAD * BT, 0:D_MODEL]
    maskl = p_ref[R_MASK:R_MASK + C_OUT * BT, D_MODEL:D_MODEL + C_OUT]
    initg = p_ref[R_INIT:R_INIT + BT, 0:D_MODEL]
    initl = p_ref[R_INIT:R_INIT + BT, D_MODEL:D_MODEL + C_OUT]
    dftm = p_ref[R_DFTE:R_DFTE + F_ROWS, 0:BT]
    etrim = p_ref[R_DFTE:R_DFTE + BT, BT:BT + F_ROWS]
    efull = p_ref[R_EFULL:R_EFULL + BTT, 0:F_ROWS]
    b_in = p_ref[R_VEC + V_BIN:R_VEC + V_BIN + 1, 0:D_MODEL]
    z0 = p_ref[R_VEC + V_Z0:R_VEC + V_Z0 + 1, 0:D_MODEL]
    b_out = p_ref[R_VEC + V_BOUT:R_VEC + V_BOUT + 1, 0:D_MODEL]
    g0 = p_ref[R_VEC + V_G0:R_VEC + V_G0 + 1, 0:D_MODEL]
    n1w = p_ref[R_VEC + V_N1W:R_VEC + V_N1W + 1, 0:D_MODEL]
    n1b = p_ref[R_VEC + V_N1B:R_VEC + V_N1B + 1, 0:D_MODEL]
    n2w = p_ref[R_VEC + V_N2W:R_VEC + V_N2W + 1, 0:D_MODEL]
    n2b = p_ref[R_VEC + V_N2B:R_VEC + V_N2B + 1, 0:D_MODEL]
    bgs = p_ref[R_VEC + V_BIN:R_VEC + V_BIN + 1, D_MODEL:D_MODEL + 2 * C_OUT]

    w1 = w_ref[RW_W1:RW_W1 + D_MODEL, 0:DFF]
    w2 = w_ref[RW_W2:RW_W2 + DFF, 0:D_MODEL]
    win = w_ref[RW_IO:RW_IO + D_MODEL, 0:D_MODEL]
    wout = w_ref[RW_IO:RW_IO + D_MODEL, D_MODEL:2 * D_MODEL]
    wgs = w_ref[RW_WGS:RW_WGS + 2 * D_MODEL, 0:2 * C_OUT]

    # ---- FourierLayer: DFT matmul -> top-K bin mask (compares) -> extrapolation matmuls ----
    spec = jnp.dot(dftm, x_in, preferred_element_type=f32)         # (F_ROWS, D) f32
    cs = spec[0:F_HALF]                                            # Re(X_k)
    ss = spec[F_HALF:F_ROWS]                                       # -Im(X_k)
    mag2 = cs * cs + ss * ss                                       # |X_k|^2 per batch/lane
    keep_rows = []
    for b in range(B):
        m = [mag2[NFREQ * b + f:NFREQ * b + f + 1] for f in range(NFREQ)]
        for f in range(NFREQ):
            ranked_above = jnp.zeros((1, D_MODEL), f32)
            for g in range(NFREQ):
                if g == f:
                    continue
                better = (m[g] >= m[f]) if g < f else (m[g] > m[f])   # stable index tie-break
                ranked_above = ranked_above + better.astype(f32)
            keep_rows.append((ranked_above < float(K)).astype(f32))
    if F_HALF > NFREQ * B:
        keep_rows.append(jnp.zeros((F_HALF - NFREQ * B, D_MODEL), f32))
    keep = jnp.concatenate(keep_rows, axis=0)                      # (F_HALF, D)
    coeffs = jnp.concatenate([cs * keep, ss * keep], axis=0)       # (F_ROWS, D)
    season_f = jnp.dot(efull, coeffs, preferred_element_type=f32)  # (BTT, D)  full season
    sea_trim = jnp.dot(etrim, coeffs, preferred_element_type=f32)  # (BT, D)   season[:, :-pred]

    x = x_in - sea_trim                                            # res - season[:, :-pred]

    # first row of every folded batch segment
    ridx = jax.lax.broadcasted_iota(jnp.int32, (BT, D_MODEL), 0)
    is_first = (ridx % SEQ_LEN) == 0

    # ---- GrowthLayer: in_proj -> head-wise first diff -> ES (f32) -> out_proj ----
    vals = jnp.dot(x.astype(bf16), win, preferred_element_type=f32) + b_in
    prev = jnp.where(is_first, z0, pltpu.roll(vals, shift=1, axis=0))
    diff = vals - prev
    diff_rep = jnp.concatenate([diff] * NHEAD, axis=0) * maskg     # (NHEAD*BT, D)
    es = jnp.dot(lgc, diff_rep, preferred_element_type=f32) + initg          # f32 ES matmul
    growth_rows = jnp.dot(es.astype(bf16), wout, preferred_element_type=f32) + b_out

    # ---- res = norm2(r + ff(r));  r = norm1(x - growth[:, 1:]) ----
    r = _layernorm(x - growth_rows, n1w, n1b)
    z = jnp.dot(r.astype(bf16), w1, preferred_element_type=f32)
    hdn = pl.reciprocal(1.0 + jnp.exp(-z), approx=True)            # sigmoid on the EUP slot
    ffo = jnp.dot(hdn.astype(bf16), w2, preferred_element_type=f32)
    res_out = _layernorm(r + ffo, n2w, n2b)

    # ---- LevelLayer: ES(level - season_pred, aux=growth_pred(growth[:, :-1])) ----
    growth_prev = jnp.where(is_first, g0, pltpu.roll(growth_rows, shift=1, axis=0))
    gs = jnp.dot(jnp.concatenate([growth_prev, sea_trim], axis=1).astype(bf16),
                 wgs, preferred_element_type=f32) + bgs            # (BT, 2C): [growth_pred|season_pred]
    g = gs[:, 0:C_OUT]
    s = gs[:, C_OUT:2 * C_OUT]
    xl = lvl - s
    stacked = jnp.concatenate(
        [jnp.concatenate([xl] * C_OUT, axis=0) * maskl,
         jnp.concatenate([g] * C_OUT, axis=0) * maskl], axis=0)    # (2*C_OUT*BT, C)
    lvl_out = jnp.dot(lac, stacked, preferred_element_type=f32) + initl      # f32 ES matmul

    # ---- packed 128-lane output slab (the out block is VMEM-resident: slice-store directly) ----
    out_ref[...] = jnp.zeros_like(out_ref)
    out_ref[0:BTT, 0:D_MODEL] = season_f                           # season (B, T_TOT, D)
    for b in range(B):                                             # growth (B, SEQ_LEN+1, D) folded
        r0 = b * (SEQ_LEN + 1)
        out_ref[r0:r0 + 1, D_MODEL:2 * D_MODEL] = g0
        out_ref[r0 + 1:r0 + 1 + SEQ_LEN, D_MODEL:2 * D_MODEL] = \
            growth_rows[b * SEQ_LEN:(b + 1) * SEQ_LEN]
    out_ref[0:BT, 2 * D_MODEL:3 * D_MODEL] = res_out               # res (B, SEQ_LEN, D)
    out_ref[0:BT, 3 * D_MODEL:3 * D_MODEL + C_OUT] = lvl_out       # level (B, SEQ_LEN, C)


# ----------------------------- deterministic parameter init (host, numpy) -----------------------------
_keys = jax.random.split(jax.random.PRNGKey(42), 16)


def _rn(k, shape, scale=0.1):
    return np.asarray(scale * jax.random.normal(k, shape), dtype=np.float32)


Win_T = _rn(_keys[0], (D_MODEL, D_MODEL))      # growth in_proj.weight.T
b_in_v = _rn(_keys[1], (1, D_MODEL))
z0_v = _rn(_keys[2], (1, D_MODEL))             # z0, (nhead, d_head) flattened head-major
sw_g = _rn(_keys[3], (NHEAD,), scale=1.0)      # growth ES smoothing weight (pre-sigmoid)
v0g = _rn(_keys[4], (1, D_MODEL))              # growth ES v0, head-major flatten
Wout_T = _rn(_keys[5], (D_MODEL, D_MODEL))     # growth out_proj.weight.T
b_out_v = _rn(_keys[6], (1, D_MODEL))
W1_T = _rn(_keys[7], (D_MODEL, DFF))           # ff linear1.weight.T (bias=False)
W2_T = _rn(_keys[8], (DFF, D_MODEL))           # ff linear2.weight.T (bias=False)
n1w_v = np.ones((1, D_MODEL), np.float32)
n1b_v = np.zeros((1, D_MODEL), np.float32)
n2w_v = np.ones((1, D_MODEL), np.float32)
n2b_v = np.zeros((1, D_MODEL), np.float32)
Wg_T = _rn(_keys[9], (D_MODEL, C_OUT))         # level growth_pred.weight.T
bg_v = _rn(_keys[10], (1, C_OUT))
Ws_T = _rn(_keys[11], (D_MODEL, C_OUT))        # level season_pred.weight.T
bs_v = _rn(_keys[12], (1, C_OUT))
sw_l = _rn(_keys[13], (C_OUT,), scale=1.0)
v0l = _rn(_keys[14], (1, C_OUT))


# ----------------------------- exponential-smoothing matrices (host) -----------------------------
def _es_weights(alpha, T):
    """L[h,t,i]=(1-a)a^{t-i}, A[h,t,i]=a^{t-i+1} (i<=t); init[h,t]=a^{t+1}."""
    tau = np.arange(T, dtype=np.float32)
    lag = tau[:, None] - tau[None, :]
    causal = (lag >= 0).astype(np.float32)
    lag0 = np.maximum(lag, 0.0)
    a = alpha[:, None, None]
    L = (1.0 - a) * (a ** lag0[None]) * causal[None]
    A = (a ** (lag0[None] + 1.0)) * causal[None]
    initw = alpha[:, None] ** (tau[None, :] + 1.0)
    return L, A, initw


def _block_cat(M):
    """(H,T,T) per-head ES matrices -> (B*T, H*B*T): batch block-diagonal, head-concatenated."""
    eyeB = np.eye(B, dtype=M.dtype)
    return np.concatenate([np.kron(eyeB, M[h]) for h in range(M.shape[0])], axis=1)


alpha_g = 1.0 / (1.0 + np.exp(-sw_g))
Lg, _, initg_w = _es_weights(alpha_g, SEQ_LEN)
alpha_l = 1.0 / (1.0 + np.exp(-sw_l))
Ll, Al, initl_w = _es_weights(alpha_l, SEQ_LEN)
Lg_cat = _block_cat(Lg)                                           # (BT, NHEAD*BT)
LA_cat = np.concatenate([_block_cat(Ll), _block_cat(Al)], axis=1)  # (BT, 2*C_OUT*BT)

maskg_m = (np.repeat(np.arange(NHEAD), BT)[:, None] ==
           (np.arange(D_MODEL) // DH)[None, :]).astype(np.float32)   # (NHEAD*BT, D)
maskl_m = (np.repeat(np.arange(C_OUT), BT)[:, None] ==
           np.arange(C_OUT)[None, :]).astype(np.float32)             # (C_OUT*BT, C)

init_term_g = np.tile(np.repeat(initg_w.T, DH, axis=1) * v0g, (B, 1))   # (BT, D): a^{t+1} * v0
init_term_l = np.tile(initl_w.T * v0l, (B, 1))                          # (BT, C)
g_row0 = v0g @ Wout_T + b_out_v                                         # (1, D): growth[:, 0]

# ----------------------------- Fourier DFT / extrapolation bases (host) -----------------------------
dft_m = np.zeros((F_ROWS, BT), np.float32)
efull_m = np.zeros((BTT, F_ROWS), np.float32)
etrim_m = np.zeros((BT, F_ROWS), np.float32)
for _b in range(B):
    for _f in range(NFREQ):
        _k = _f + 1                                               # low_freq = 1
        _r = _b * NFREQ + _f
        _ai = 2.0 * np.pi * _k * np.arange(SEQ_LEN) / SEQ_LEN
        _ao = 2.0 * np.pi * _k * np.arange(T_TOT) / SEQ_LEN
        dft_m[_r, _b * SEQ_LEN:(_b + 1) * SEQ_LEN] = np.cos(_ai)
        dft_m[F_HALF + _r, _b * SEQ_LEN:(_b + 1) * SEQ_LEN] = np.sin(_ai)
        efull_m[_b * T_TOT:(_b + 1) * T_TOT, _r] = (2.0 / SEQ_LEN) * np.cos(_ao)
        efull_m[_b * T_TOT:(_b + 1) * T_TOT, F_HALF + _r] = (2.0 / SEQ_LEN) * np.sin(_ao)
        etrim_m[_b * SEQ_LEN:(_b + 1) * SEQ_LEN, _r] = (2.0 / SEQ_LEN) * np.cos(_ai)
        etrim_m[_b * SEQ_LEN:(_b + 1) * SEQ_LEN, F_HALF + _r] = (2.0 / SEQ_LEN) * np.sin(_ai)

# ----------------------------- packed constant slabs -----------------------------
P_np = np.zeros((P_ROWS, OUT_LANES), np.float32)
P_np[R_LAC:R_LAC + BT, 0:2 * C_OUT * BT] = LA_cat
P_np[R_LGC:R_LGC + BT, 0:NHEAD * BT] = Lg_cat
P_np[R_MASK:R_MASK + NHEAD * BT, 0:D_MODEL] = maskg_m
P_np[R_MASK:R_MASK + C_OUT * BT, D_MODEL:D_MODEL + C_OUT] = maskl_m
P_np[R_INIT:R_INIT + BT, 0:D_MODEL] = init_term_g
P_np[R_INIT:R_INIT + BT, D_MODEL:D_MODEL + C_OUT] = init_term_l
P_np[R_DFTE:R_DFTE + F_ROWS, 0:BT] = dft_m
P_np[R_DFTE:R_DFTE + BT, BT:BT + F_ROWS] = etrim_m
P_np[R_EFULL:R_EFULL + BTT, 0:F_ROWS] = efull_m
for _row, _vec in ((V_BIN, b_in_v), (V_Z0, z0_v), (V_BOUT, b_out_v), (V_G0, g_row0),
                   (V_N1W, n1w_v), (V_N1B, n1b_v), (V_N2W, n2w_v), (V_N2B, n2b_v)):
    P_np[R_VEC + _row, 0:D_MODEL] = _vec[0]
P_np[R_VEC + V_BIN, D_MODEL:D_MODEL + 2 * C_OUT] = np.concatenate([bg_v, bs_v], axis=1)[0]

WGS_np = np.zeros((2 * D_MODEL, 2 * C_OUT), np.float32)
WGS_np[0:D_MODEL, 0:C_OUT] = Wg_T
WGS_np[D_MODEL:2 * D_MODEL, C_OUT:2 * C_OUT] = Ws_T

W_np = np.zeros((W_ROWS, OUT_LANES), np.float32)
W_np[RW_W1:RW_W1 + D_MODEL, 0:DFF] = W1_T
W_np[RW_W2:RW_W2 + DFF, 0:D_MODEL] = W2_T
W_np[RW_IO:RW_IO + D_MODEL, 0:D_MODEL] = Win_T
W_np[RW_IO:RW_IO + D_MODEL, D_MODEL:2 * D_MODEL] = Wout_T
W_np[RW_WGS:RW_WGS + 2 * D_MODEL, 0:2 * C_OUT] = WGS_np

P_CONST = jnp.asarray(P_np, dtype=jnp.float32)
W_CONST = jnp.asarray(W_np, dtype=jnp.bfloat16)


# ----------------------------- wrapper -----------------------------
def _full_spec(shape):
    nd = len(shape)
    return pl.BlockSpec(tuple(shape), lambda i, nd=nd: (0,) * nd)


@jax.jit
def ets_encoder_layer(res, level):
    res_s = res.reshape(BT, D_MODEL)          # fold batch into sublanes
    lvl_s = level.reshape(BT, C_OUT)

    operands = (res_s, lvl_s, P_CONST, W_CONST)
    packed = pl.pallas_call(
        _ets_fused_kernel,
        grid=(1,),
        out_shape=jax.ShapeDtypeStruct((BTT, OUT_LANES), jnp.float32),
        in_specs=[_full_spec(a.shape) for a in operands],
        out_specs=_full_spec((BTT, OUT_LANES)),
        compiler_params=pltpu.CompilerParams(dimension_semantics=("arbitrary",)),
    )(*operands)

    season = packed[0:BTT, 0:D_MODEL].reshape(B, T_TOT, D_MODEL)
    growth = packed[0:B * (SEQ_LEN + 1), D_MODEL:2 * D_MODEL].reshape(B, SEQ_LEN + 1, D_MODEL)
    res_out = packed[0:BT, 2 * D_MODEL:3 * D_MODEL].reshape(B, SEQ_LEN, D_MODEL)
    level_out = packed[0:BT, 3 * D_MODEL:3 * D_MODEL + C_OUT].reshape(B, SEQ_LEN, C_OUT)
    return res_out, level_out, growth, season


# ----------------------------- main -----------------------------
if __name__ == "__main__":
    key = jax.random.PRNGKey(0)
    k1, k2 = jax.random.split(key)
    res = jax.random.normal(k1, (B, SEQ_LEN, D_MODEL), dtype=jnp.float32)
    level = jax.random.normal(k2, (B, SEQ_LEN, C_OUT), dtype=jnp.float32)

    outs = ets_encoder_layer(res, level)
    outs = jax.block_until_ready(outs)

    r_out, l_out, g_out, s_out = outs
    assert r_out.shape == (B, SEQ_LEN, D_MODEL)
    assert l_out.shape == (B, SEQ_LEN, C_OUT)
    assert g_out.shape == (B, SEQ_LEN + 1, D_MODEL)
    assert s_out.shape == (B, SEQ_LEN + PRED_LEN, D_MODEL)
    assert all(bool(jnp.all(jnp.isfinite(o))) for o in outs)
    print("KERNEL_OK")
</pallas_src>

<mosaic_0001>
module attributes {stable_mosaic.version = 11 : i64} {
  func.func @_ets_fused_kernel(%arg0: i32, %arg1: memref<16x32xf32, #tpu.memory_space<vmem>>, %arg2: memref<16x4xf32, #tpu.memory_space<vmem>>, %arg3: memref<160x128xf32, #tpu.memory_space<vmem>>, %arg4: memref<256x128xbf16, #tpu.memory_space<vmem>>, %arg5: memref<24x128xf32, #tpu.memory_space<vmem>>) attributes {dimension_semantics = [#tpu.dimension_semantics<arbitrary>], iteration_bounds = array<i64: 1>, scalar_prefetch = 0 : i64, scratch_operands = 0 : i64, tpu.core_type = #tpu.core_type<tc>, window_params = [{pipeline_mode = #tpu.pipeline_mode<synchronous>, transform_indices = @transform_0, window_bounds = array<i64: 16, 32>}, {pipeline_mode = #tpu.pipeline_mode<synchronous>, transform_indices = @transform_1, window_bounds = array<i64: 16, 4>}, {pipeline_mode = #tpu.pipeline_mode<synchronous>, transform_indices = @transform_2, window_bounds = array<i64: 160, 128>}, {pipeline_mode = #tpu.pipeline_mode<synchronous>, transform_indices = @transform_3, window_bounds = array<i64: 256, 128>}, {pipeline_mode = #tpu.pipeline_mode<synchronous>, transform_indices = @transform_4, window_bounds = array<i64: 24, 128>}]} {
    %c0 = arith.constant 0 : index
    %c0_0 = arith.constant 0 : index
    %0 = vector.load %arg1[%c0, %c0_0] : memref<16x32xf32, #tpu.memory_space<vmem>>, vector<16x32xf32>
    %c0_1 = arith.constant 0 : index
    %c0_2 = arith.constant 0 : index
    %1 = vector.load %arg2[%c0_1, %c0_2] : memref<16x4xf32, #tpu.memory_space<vmem>>, vector<16x4xf32>
    %c0_3 = arith.constant 0 : index
    %c0_4 = arith.constant 0 : index
    %2 = vector.load %arg3[%c0_3, %c0_4] : memref<160x128xf32, #tpu.memory_space<vmem>>, vector<16x128xf32>
    %c16 = arith.constant 16 : index
    %c0_5 = arith.constant 0 : index
    %3 = vector.load %arg3[%c16, %c0_5] : memref<160x128xf32, #tpu.memory_space<vmem>>, vector<16x64xf32>
    %c32 = arith.constant 32 : index
    %c0_6 = arith.constant 0 : index
    %4 = vector.load %arg3[%c32, %c0_6] : memref<160x128xf32, #tpu.memory_space<vmem>>, vector<64x32xf32>
    %c32_7 = arith.constant 32 : index
    %c32_8 = arith.constant 32 : index
    %5 = vector.load %arg3[%c32_7, %c32_8] : memref<160x128xf32, #tpu.memory_space<vmem>>, vector<64x4xf32>
    %c96 = arith.constant 96 : index
    %c0_9 = arith.constant 0 : index
    %6 = vector.load %arg3[%c96, %c0_9] : memref<160x128xf32, #tpu.memory_space<vmem>>, vector<16x32xf32>
    %c96_10 = arith.constant 96 : index
    %c32_11 = arith.constant 32 : index
    %7 = vector.load %arg3[%c96_10, %c32_11] : memref<160x128xf32, #tpu.memory_space<vmem>>, vector<16x4xf32>
    %c112 = arith.constant 112 : index
    %c0_12 = arith.constant 0 : index
    %8 = vector.load %arg3[%c112, %c0_12] : memref<160x128xf32, #tpu.memory_space<vmem>>, vector<16x16xf32>
    %c112_13 = arith.constant 112 : index
    %c16_14 = arith.constant 16 : index
    %9 = vector.load %arg3[%c112_13, %c16_14] : memref<160x128xf32, #tpu.memory_space<vmem>>, vector<16x16xf32>
    %c128 = arith.constant 128 : index
    %c0_15 = arith.constant 0 : index
    %10 = vector.load %arg3[%c128, %c0_15] : memref<160x128xf32, #tpu.memory_space<vmem>>, vector<24x16xf32>
    %c152 = arith.constant 152 : index
    %c0_16 = arith.constant 0 : index
    %11 = vector.load %arg3[%c152, %c0_16] : memref<160x128xf32, #tpu.memory_space<vmem>>, vector<1x32xf32>
    %c153 = arith.constant 153 : index
    %c0_17 = arith.constant 0 : index
    %12 = vector.load %arg3[%c153, %c0_17] : memref<160x128xf32, #tpu.memory_space<vmem>>, vector<1x32xf32>
    %c154 = arith.constant 154 : index
    %c0_18 = arith.constant 0 : index
    %13 = vector.load %arg3[%c154, %c0_18] : memref<160x128xf32, #tpu.memory_space<vmem>>, vector<1x32xf32>
    %c155 = arith.constant 155 : index
    %c0_19 = arith.constant 0 : index
    %14 = vector.load %arg3[%c155, %c0_19] : memref<160x128xf32, #tpu.memory_space<vmem>>, vector<1x32xf32>
    %c156 = arith.constant 156 : index
    %c0_20 = arith.constant 0 : index
    %15 = vector.load %arg3[%c156, %c0_20] : memref<160x128xf32, #tpu.memory_space<vmem>>, vector<1x32xf32>
    %c157 = arith.constant 157 : index
    %c0_21 = arith.constant 0 : index
    %16 = vector.load %arg3[%c157, %c0_21] : memref<160x128xf32, #tpu.memory_space<vmem>>, vector<1x32xf32>
    %c158 = arith.constant 158 : index
    %c0_22 = arith.constant 0 : index
    %17 = vector.load %arg3[%c158, %c0_22] : memref<160x128xf32, #tpu.memory_space<vmem>>, vector<1x32xf32>
    %c159 = arith.constant 159 : index
    %c0_23 = arith.constant 0 : index
    %18 = vector.load %arg3[%c159, %c0_23] : memref<160x128xf32, #tpu.memory_space<vmem>>, vector<1x32xf32>
    %c152_24 = arith.constant 152 : index
    %c32_25 = arith.constant 32 : index
    %19 = vector.load %arg3[%c152_24, %c32_25] : memref<160x128xf32, #tpu.memory_space<vmem>>, vector<1x8xf32>
    %c0_26 = arith.constant 0 : index
    %c0_27 = arith.constant 0 : index
    %20 = vector.load %arg4[%c0_26, %c0_27] : memref<256x128xbf16, #tpu.memory_space<vmem>>, vector<32x128xbf16>
    %c32_28 = arith.constant 32 : index
    %c0_29 = arith.constant 0 : index
    %21 = vector.load %arg4[%c32_28, %c0_29] : memref<256x128xbf16, #tpu.memory_space<vmem>>, vector<128x32xbf16>
    %c160 = arith.constant 160 : index
    %c0_30 = arith.constant 0 : index
    %22 = vector.load %arg4[%c160, %c0_30] : memref<256x128xbf16, #tpu.memory_space<vmem>>, vector<32x32xbf16>
    %c160_31 = arith.constant 160 : index
    %c32_32 = arith.constant 32 : index
    %23 = vector.load %arg4[%c160_31, %c32_32] : memref<256x128xbf16, #tpu.memory_space<vmem>>, vector<32x32xbf16>
    %c192 = arith.constant 192 : index
    %c0_33 = arith.constant 0 : index
    %24 = vector.load %arg4[%c192, %c0_33] : memref<256x128xbf16, #tpu.memory_space<vmem>>, vector<64x8xbf16>
    %cst = arith.constant dense<0.000000e+00> : vector<16x32xf32>
    %25 = tpu.matmul %8, %0, %cst {dimension_numbers = #tpu.dot_dimension_numbers<[1], [0], [0], [1], [0, 0, 1, 1], [], []>} : vector<16x16xf32>, vector<16x32xf32>, vector<16x32xf32> -> vector<16x32xf32>
    %26 = vector.extract_strided_slice %25 {offsets = [0, 0], sizes = [8, 32], strides = [1, 1]} : vector<16x32xf32> to vector<8x32xf32>
    %27 = vector.extract_strided_slice %25 {offsets = [8, 0], sizes = [8, 32], strides = [1, 1]} : vector<16x32xf32> to vector<8x32xf32>
    %28 = arith.mulf %26, %26 : vector<8x32xf32>
    %29 = arith.mulf %27, %27 : vector<8x32xf32>
    %30 = arith.addf %28, %29 : vector<8x32xf32>
    %31 = vector.extract_strided_slice %30 {offsets = [0, 0], sizes = [1, 32], strides = [1, 1]} : vector<8x32xf32> to vector<1x32xf32>
    %32 = vector.extract_strided_slice %30 {offsets = [1, 0], sizes = [1, 32], strides = [1, 1]} : vector<8x32xf32> to vector<1x32xf32>
    %33 = vector.extract_strided_slice %30 {offsets = [2, 0], sizes = [1, 32], strides = [1, 1]} : vector<8x32xf32> to vector<1x32xf32>
    %cst_34 = arith.constant 0.000000e+00 : f32
    %34 = vector.broadcast %cst_34 : f32 to vector<1x32xf32>
    %35 = arith.cmpf ogt, %32, %31 : vector<1x32xf32>
    %36 = arith.extui %35 : vector<1x32xi1> to vector<1x32xi32>
    %37 = arith.sitofp %36 : vector<1x32xi32> to vector<1x32xf32>
    %38 = arith.addf %34, %37 : vector<1x32xf32>
    %39 = arith.cmpf ogt, %33, %31 : vector<1x32xf32>
    %40 = arith.extui %39 : vector<1x32xi1> to vector<1x32xi32>
    %41 = arith.sitofp %40 : vector<1x32xi32> to vector<1x32xf32>
    %42 = arith.addf %38, %41 : vector<1x32xf32>
    %cst_35 = arith.constant 2.000000e+00 : f32
    %43 = vector.broadcast %cst_35 : f32 to vector<1x32xf32>
    %44 = arith.cmpf olt, %42, %43 : vector<1x32xf32>
    %45 = arith.extui %44 : vector<1x32xi1> to vector<1x32xi32>
    %46 = arith.sitofp %45 : vector<1x32xi32> to vector<1x32xf32>
    %cst_36 = arith.constant 0.000000e+00 : f32
    %47 = vector.broadcast %cst_36 : f32 to vector<1x32xf32>
    %48 = arith.cmpf oge, %31, %32 : vector<1x32xf32>
    %49 = arith.extui %48 : vector<1x32xi1> to vector<1x32xi32>
    %50 = arith.sitofp %49 : vector<1x32xi32> to vector<1x32xf32>
    %51 = arith.addf %47, %50 : vector<1x32xf32>
    %52 = arith.cmpf ogt, %33, %32 : vector<1x32xf32>
    %53 = arith.extui %52 : vector<1x32xi1> to vector<1x32xi32>
    %54 = arith.sitofp %53 : vector<1x32xi32> to vector<1x32xf32>
    %55 = arith.addf %51, %54 : vector<1x32xf32>
    %cst_37 = arith.constant 2.000000e+00 : f32
    %56 = vector.broadcast %cst_37 : f32 to vector<1x32xf32>
    %57 = arith.cmpf olt, %55, %56 : vector<1x32xf32>
    %58 = arith.extui %57 : vector<1x32xi1> to vector<1x32xi32>
    %59 = arith.sitofp %58 : vector<1x32xi32> to vector<1x32xf32>
    %cst_38 = arith.constant 0.000000e+00 : f32
    %60 = vector.broadcast %cst_38 : f32 to vector<1x32xf32>
    %61 = arith.cmpf oge, %31, %33 : vector<1x32xf32>
    %62 = arith.extui %61 : vector<1x32xi1> to vector<1x32xi32>
    %63 = arith.sitofp %62 : vector<1x32xi32> to vector<1x32xf32>
    %64 = arith.addf %60, %63 : vector<1x32xf32>
    %65 = arith.cmpf oge, %32, %33 : vector<1x32xf32>
    %66 = arith.extui %65 : vector<1x32xi1> to vector<1x32xi32>
    %67 = arith.sitofp %66 : vector<1x32xi32> to vector<1x32xf32>
    %68 = arith.addf %64, %67 : vector<1x32xf32>
    %cst_39 = arith.constant 2.000000e+00 : f32
    %69 = vector.broadcast %cst_39 : f32 to vector<1x32xf32>
    %70 = arith.cmpf olt, %68, %69 : vector<1x32xf32>
    %71 = arith.extui %70 : vector<1x32xi1> to vector<1x32xi32>
    %72 = arith.sitofp %71 : vector<1x32xi32> to vector<1x32xf32>
    %73 = vector.extract_strided_slice %30 {offsets = [3, 0], sizes = [1, 32], strides = [1, 1]} : vector<8x32xf32> to vector<1x32xf32>
    %74 = vector.extract_strided_slice %30 {offsets = [4, 0], sizes = [1, 32], strides = [1, 1]} : vector<8x32xf32> to vector<1x32xf32>
    %75 = vector.extract_strided_slice %30 {offsets = [5, 0], sizes = [1, 32], strides = [1, 1]} : vector<8x32xf32> to vector<1x32xf32>
    %cst_40 = arith.constant 0.000000e+00 : f32
    %76 = vector.broadcast %cst_40 : f32 to vector<1x32xf32>
    %77 = arith.cmpf ogt, %74, %73 : vector<1x32xf32>
    %78 = arith.extui %77 : vector<1x32xi1> to vector<1x32xi32>
    %79 = arith.sitofp %78 : vector<1x32xi32> to vector<1x32xf32>
    %80 = arith.addf %76, %79 : vector<1x32xf32>
    %81 = arith.cmpf ogt, %75, %73 : vector<1x32xf32>
    %82 = arith.extui %81 : vector<1x32xi1> to vector<1x32xi32>
    %83 = arith.sitofp %82 : vector<1x32xi32> to vector<1x32xf32>
    %84 = arith.addf %80, %83 : vector<1x32xf32>
    %cst_41 = arith.constant 2.000000e+00 : f32
    %85 = vector.broadcast %cst_41 : f32 to vector<1x32xf32>
    %86 = arith.cmpf olt, %84, %85 : vector<1x32xf32>
    %87 = arith.extui %86 : vector<1x32xi1> to vector<1x32xi32>
    %88 = arith.sitofp %87 : vector<1x32xi32> to vector<1x32xf32>
    %cst_42 = arith.constant 0.000000e+00 : f32
    %89 = vector.broadcast %cst_42 : f32 to vector<1x32xf32>
    %90 = arith.cmpf oge, %73, %74 : vector<1x32xf32>
    %91 = arith.extui %90 : vector<1x32xi1> to vector<1x32xi32>
    %92 = arith.sitofp %91 : vector<1x32xi32> to vector<1x32xf32>
    %93 = arith.addf %89, %92 : vector<1x32xf32>
    %94 = arith.cmpf ogt, %75, %74 : vector<1x32xf32>
    %95 = arith.extui %94 : vector<1x32xi1> to vector<1x32xi32>
    %96 = arith.sitofp %95 : vector<1x32xi32> to vector<1x32xf32>
    %97 = arith.addf %93, %96 : vector<1x32xf32>
    %cst_43 = arith.constant 2.000000e+00 : f32
    %98 = vector.broadcast %cst_43 : f32 to vector<1x32xf32>
    %99 = arith.cmpf olt, %97, %98 : vector<1x32xf32>
    %100 = arith.extui %99 : vector<1x32xi1> to vector<1x32xi32>
    %101 = arith.sitofp %100 : vector<1x32xi32> to vector<1x32xf32>
    %cst_44 = arith.constant 0.000000e+00 : f32
    %102 = vector.broadcast %cst_44 : f32 to vector<1x32xf32>
    %103 = arith.cmpf oge, %73, %75 : vector<1x32xf32>
    %104 = arith.extui %103 : vector<1x32xi1> to vector<1x32xi32>
    %105 = arith.sitofp %104 : vector<1x32xi32> to vector<1x32xf32>
    %106 = arith.addf %102, %105 : vector<1x32xf32>
    %107 = arith.cmpf oge, %74, %75 : vector<1x32xf32>
    %108 = arith.extui %107 : vector<1x32xi1> to vector<1x32xi32>
    %109 = arith.sitofp %108 : vector<1x32xi32> to vector<1x32xf32>
    %110 = arith.addf %106, %109 : vector<1x32xf32>
    %cst_45 = arith.constant 2.000000e+00 : f32
    %111 = vector.broadcast %cst_45 : f32 to vector<1x32xf32>
    %112 = arith.cmpf olt, %110, %111 : vector<1x32xf32>
    %113 = arith.extui %112 : vector<1x32xi1> to vector<1x32xi32>
    %114 = arith.sitofp %113 : vector<1x32xi32> to vector<1x32xf32>
    %cst_46 = arith.constant 0.000000e+00 : f32
    %115 = vector.broadcast %cst_46 : f32 to vector<2x32xf32>
    %116 = tpu.concatenate %46, %59, %72, %88, %101, %114, %115 in 0 : vector<1x32xf32>, vector<1x32xf32>, vector<1x32xf32>, vector<1x32xf32>, vector<1x32xf32>, vector<1x32xf32>, vector<2x32xf32> -> vector<8x32xf32>
    %117 = arith.mulf %26, %116 : vector<8x32xf32>
    %118 = arith.mulf %27, %116 : vector<8x32xf32>
    %119 = tpu.concatenate %117, %118 in 0 : vector<8x32xf32>, vector<8x32xf32> -> vector<16x32xf32>
    %cst_47 = arith.constant dense<0.000000e+00> : vector<24x32xf32>
    %120 = tpu.matmul %10, %119, %cst_47 {dimension_numbers = #tpu.dot_dimension_numbers<[1], [0], [0], [1], [0, 0, 1, 1], [], []>} : vector<24x16xf32>, vector<16x32xf32>, vector<24x32xf32> -> vector<24x32xf32>
    %cst_48 = arith.constant dense<0.000000e+00> : vector<16x32xf32>
    %121 = tpu.matmul %9, %119, %cst_48 {dimension_numbers = #tpu.dot_dimension_numbers<[1], [0], [0], [1], [0, 0, 1, 1], [], []>} : vector<16x16xf32>, vector<16x32xf32>, vector<16x32xf32> -> vector<16x32xf32>
    %122 = arith.subf %0, %121 : vector<16x32xf32>
    %123 = tpu.iota {dimensions = array<i32: 0>} : vector<16x32xi32>
    %c8_i32 = arith.constant 8 : i32
    %c0_i32 = arith.constant 0 : i32
    %124 = arith.cmpi eq, %c8_i32, %c0_i32 : i32
    %c1_i32 = arith.constant 1 : i32
    %125 = arith.select %124, %c1_i32, %c8_i32 : i32
    %126 = vector.broadcast %125 : i32 to vector<16x32xi32>
    %127 = arith.remsi %123, %126 : vector<16x32xi32>
    %c0_i32_49 = arith.constant 0 : i32
    %128 = vector.broadcast %c0_i32_49 : i32 to vector<16x32xi32>
    %129 = arith.cmpi ne, %127, %128 : vector<16x32xi32>
    %c0_i32_50 = arith.constant 0 : i32
    %130 = vector.broadcast %c0_i32_50 : i32 to vector<16x32xi32>
    %131 = arith.cmpi slt, %127, %130 : vector<16x32xi32>
    %c0_i32_51 = arith.constant 0 : i32
    %132 = arith.cmpi slt, %125, %c0_i32_51 : i32
    %133 = vector.broadcast %132 : i1 to vector<16x32xi1>
    %134 = vector.broadcast %133 : vector<16x32xi1> to vector<16x32xi1>
    %135 = arith.xori %131, %134 : vector<16x32xi1>
    %136 = arith.andi %135, %129 : vector<16x32xi1>
    %137 = vector.broadcast %125 : i32 to vector<16x32xi32>
    %138 = arith.addi %127, %137 : vector<16x32xi32>
    %139 = arith.select %136, %138, %127 : vector<16x32xi1>, vector<16x32xi32>
    %c0_i32_52 = arith.constant 0 : i32
    %140 = vector.broadcast %c0_i32_52 : i32 to vector<16x32xi32>
    %141 = arith.cmpi eq, %139, %140 : vector<16x32xi32>
    %142 = arith.truncf %122 : vector<16x32xf32> to vector<16x32xbf16>
    %cst_53 = arith.constant dense<0.000000e+00> : vector<16x32xf32>
    %143 = tpu.matmul %142, %22, %cst_53 {dimension_numbers = #tpu.dot_dimension_numbers<[1], [0], [0], [1], [0, 0, 1, 1], [], []>} : vector<16x32xbf16>, vector<32x32xbf16>, vector<16x32xf32> -> vector<16x32xf32>
    %144 = vector.broadcast %11 : vector<1x32xf32> to vector<16x32xf32>
    %145 = arith.addf %143, %144 : vector<16x32xf32>
    %c1_i32_54 = arith.constant 1 : i32
    %146 = tpu.dynamic_rotate %145 by %c1_i32_54 dim 0 : vector<16x32xf32>, i32 -> vector<16x32xf32>
    %147 = vector.shape_cast %12 : vector<1x32xf32> to vector<1x32xf32>
    %148 = vector.broadcast %147 : vector<1x32xf32> to vector<16x32xf32>
    %149 = arith.select %141, %148, %146 : vector<16x32xi1>, vector<16x32xf32>
    %150 = arith.subf %145, %149 : vector<16x32xf32>
    %151 = tpu.concatenate %150, %150, %150, %150 in 0 : vector<16x32xf32>, vector<16x32xf32>, vector<16x32xf32>, vector<16x32xf32> -> vector<64x32xf32>
    %152 = arith.mulf %151, %4 : vector<64x32xf32>
    %cst_55 = arith.constant dense<0.000000e+00> : vector<16x32xf32>
    %153 = tpu.matmul %3, %152, %cst_55 {dimension_numbers = #tpu.dot_dimension_numbers<[1], [0], [0], [1], [0, 0, 1, 1], [], []>} : vector<16x64xf32>, vector<64x32xf32>, vector<16x32xf32> -> vector<16x32xf32>
    %154 = arith.addf %153, %6 : vector<16x32xf32>
    %155 = arith.truncf %154 : vector<16x32xf32> to vector<16x32xbf16>
    %cst_56 = arith.constant dense<0.000000e+00> : vector<16x32xf32>
    %156 = tpu.matmul %155, %23, %cst_56 {dimension_numbers = #tpu.dot_dimension_numbers<[1], [0], [0], [1], [0, 0, 1, 1], [], []>} : vector<16x32xbf16>, vector<32x32xbf16>, vector<16x32xf32> -> vector<16x32xf32>
    %157 = vector.broadcast %13 : vector<1x32xf32> to vector<16x32xf32>
    %158 = arith.addf %156, %157 : vector<16x32xf32>
    %159 = arith.subf %122, %158 : vector<16x32xf32>
    %cst_57 = arith.constant dense<0.000000e+00> : vector<16xf32>
    %160 = vector.multi_reduction <add>, %159, %cst_57 [1] : vector<16x32xf32> to vector<16xf32>
    %161 = vector.shape_cast %160 : vector<16xf32> to vector<16x1xf32>
    %cst_58 = arith.constant 3.200000e+01 : f32
    %162 = vector.broadcast %cst_58 : f32 to vector<16x1xf32>
    %163 = arith.divf %161, %162 : vector<16x1xf32>
    %164 = vector.broadcast %163 : vector<16x1xf32> to vector<16x32xf32>
    %165 = arith.subf %159, %164 : vector<16x32xf32>
    %166 = arith.mulf %165, %165 : vector<16x32xf32>
    %cst_59 = arith.constant dense<0.000000e+00> : vector<16xf32>
    %167 = vector.multi_reduction <add>, %166, %cst_59 [1] : vector<16x32xf32> to vector<16xf32>
    %168 = vector.shape_cast %167 : vector<16xf32> to vector<16x1xf32>
    %cst_60 = arith.constant 3.200000e+01 : f32
    %169 = vector.broadcast %cst_60 : f32 to vector<16x1xf32>
    %170 = arith.divf %168, %169 : vector<16x1xf32>
    %cst_61 = arith.constant 9.99999974E-6 : f32
    %171 = vector.broadcast %cst_61 : f32 to vector<16x1xf32>
    %172 = arith.addf %170, %171 : vector<16x1xf32>
    %173 = math.rsqrt %172 : vector<16x1xf32>
    %174 = vector.broadcast %173 : vector<16x1xf32> to vector<16x32xf32>
    %175 = arith.mulf %165, %174 : vector<16x32xf32>
    %176 = vector.broadcast %15 : vector<1x32xf32> to vector<16x32xf32>
    %177 = arith.mulf %175, %176 : vector<16x32xf32>
    %178 = vector.broadcast %16 : vector<1x32xf32> to vector<16x32xf32>
    %179 = arith.addf %177, %178 : vector<16x32xf32>
    %180 = arith.truncf %179 : vector<16x32xf32> to vector<16x32xbf16>
    %cst_62 = arith.constant dense<0.000000e+00> : vector<16x128xf32>
    %181 = tpu.matmul %180, %20, %cst_62 {dimension_numbers = #tpu.dot_dimension_numbers<[1], [0], [0], [1], [0, 0, 1, 1], [], []>} : vector<16x32xbf16>, vector<32x128xbf16>, vector<16x128xf32> -> vector<16x128xf32>
    %cst_63 = arith.constant 0.000000e+00 : f32
    %182 = vector.broadcast %cst_63 : f32 to vector<16x128xf32>
    %183 = arith.subf %182, %181 : vector<16x128xf32>
    %184 = math.exp %183 : vector<16x128xf32>
    %cst_64 = arith.constant 1.000000e+00 : f32
    %185 = vector.broadcast %cst_64 : f32 to vector<16x128xf32>
    %186 = arith.addf %185, %184 : vector<16x128xf32>
    %187 = tpu.reciprocal %186 {approx = true} : vector<16x128xf32> -> vector<16x128xf32>
    %188 = arith.truncf %187 : vector<16x128xf32> to vector<16x128xbf16>
    %cst_65 = arith.constant dense<0.000000e+00> : vector<16x32xf32>
    %189 = tpu.matmul %188, %21, %cst_65 {dimension_numbers = #tpu.dot_dimension_numbers<[1], [0], [0], [1], [0, 0, 1, 1], [], []>} : vector<16x128xbf16>, vector<128x32xbf16>, vector<16x32xf32> -> vector<16x32xf32>
    %190 = arith.addf %179, %189 : vector<16x32xf32>
    %cst_66 = arith.constant dense<0.000000e+00> : vector<16xf32>
    %191 = vector.multi_reduction <add>, %190, %cst_66 [1] : vector<16x32xf32> to vector<16xf32>
    %192 = vector.shape_cast %191 : vector<16xf32> to vector<16x1xf32>
    %cst_67 = arith.constant 3.200000e+01 : f32
    %193 = vector.broadcast %cst_67 : f32 to vector<16x1xf32>
    %194 = arith.divf %192, %193 : vector<16x1xf32>
    %195 = vector.broadcast %194 : vector<16x1xf32> to vector<16x32xf32>
    %196 = arith.subf %190, %195 : vector<16x32xf32>
    %197 = arith.mulf %196, %196 : vector<16x32xf32>
    %cst_68 = arith.constant dense<0.000000e+00> : vector<16xf32>
    %198 = vector.multi_reduction <add>, %197, %cst_68 [1] : vector<16x32xf32> to vector<16xf32>
    %199 = vector.shape_cast %198 : vector<16xf32> to vector<16x1xf32>
    %cst_69 = arith.constant 3.200000e+01 : f32
    %200 = vector.broadcast %cst_69 : f32 to vector<16x1xf32>
    %201 = arith.divf %199, %200 : vector<16x1xf32>
    %cst_70 = arith.constant 9.99999974E-6 : f32
    %202 = vector.broadcast %cst_70 : f32 to vector<16x1xf32>
    %203 = arith.addf %201, %202 : vector<16x1xf32>
    %204 = math.rsqrt %203 : vector<16x1xf32>
    %205 = vector.broadcast %204 : vector<16x1xf32> to vector<16x32xf32>
    %206 = arith.mulf %196, %205 : vector<16x32xf32>
    %207 = vector.broadcast %17 : vector<1x32xf32> to vector<16x32xf32>
    %208 = arith.mulf %206, %207 : vector<16x32xf32>
    %209 = vector.broadcast %18 : vector<1x32xf32> to vector<16x32xf32>
    %210 = arith.addf %208, %209 : vector<16x32xf32>
    %c1_i32_71 = arith.constant 1 : i32
    %211 = tpu.dynamic_rotate %158 by %c1_i32_71 dim 0 : vector<16x32xf32>, i32 -> vector<16x32xf32>
    %212 = vector.shape_cast %14 : vector<1x32xf32> to vector<1x32xf32>
    %213 = vector.broadcast %212 : vector<1x32xf32> to vector<16x32xf32>
    %214 = arith.select %141, %213, %211 : vector<16x32xi1>, vector<16x32xf32>
    %215 = tpu.concatenate %214, %121 in 1 : vector<16x32xf32>, vector<16x32xf32> -> vector<16x64xf32>
    %216 = arith.truncf %215 : vector<16x64xf32> to vector<16x64xbf16>
    %cst_72 = arith.constant dense<0.000000e+00> : vector<16x8xf32>
    %217 = tpu.matmul %216, %24, %cst_72 {dimension_numbers = #tpu.dot_dimension_numbers<[1], [0], [0], [1], [0, 0, 1, 1], [], []>} : vector<16x64xbf16>, vector<64x8xbf16>, vector<16x8xf32> -> vector<16x8xf32>
    %218 = vector.broadcast %19 : vector<1x8xf32> to vector<16x8xf32>
    %219 = arith.addf %217, %218 : vector<16x8xf32>
    %220 = vector.extract_strided_slice %219 {offsets = [0, 0], sizes = [16, 4], strides = [1, 1]} : vector<16x8xf32> to vector<16x4xf32>
    %221 = vector.extract_strided_slice %219 {offsets = [0, 4], sizes = [16, 4], strides = [1, 1]} : vector<16x8xf32> to vector<16x4xf32>
    %222 = arith.subf %1, %221 : vector<16x4xf32>
    %223 = tpu.concatenate %222, %222, %222, %222 in 0 : vector<16x4xf32>, vector<16x4xf32>, vector<16x4xf32>, vector<16x4xf32> -> vector<64x4xf32>
    %224 = arith.mulf %223, %5 : vector<64x4xf32>
    %225 = tpu.concatenate %220, %220, %220, %220 in 0 : vector<16x4xf32>, vector<16x4xf32>, vector<16x4xf32>, vector<16x4xf32> -> vector<64x4xf32>
    %226 = arith.mulf %225, %5 : vector<64x4xf32>
    %227 = tpu.concatenate %224, %226 in 0 : vector<64x4xf32>, vector<64x4xf32> -> vector<128x4xf32>
    %cst_73 = arith.constant dense<0.000000e+00> : vector<16x4xf32>
    %228 = tpu.matmul %2, %227, %cst_73 {dimension_numbers = #tpu.dot_dimension_numbers<[1], [0], [0], [1], [0, 0, 1, 1], [], []>} : vector<16x128xf32>, vector<128x4xf32>, vector<16x4xf32> -> vector<16x4xf32>
    %229 = arith.addf %228, %7 : vector<16x4xf32>
    %cst_74 = arith.constant 0.000000e+00 : f32
    %230 = vector.broadcast %cst_74 : f32 to vector<24x128xf32>
    %c0_75 = arith.constant 0 : index
    %c0_76 = arith.constant 0 : index
    %231 = vector.load %arg5[%c0_75, %c0_76] : memref<24x128xf32, #tpu.memory_space<vmem>>, vector<24x128xf32>
    tpu.vector_store %arg5[%c0_75, %c0_76], %230 {strides = array<i32>} : memref<24x128xf32, #tpu.memory_space<vmem>>, vector<24x128xf32>,
    %c0_77 = arith.constant 0 : index
    %c0_78 = arith.constant 0 : index
    %232 = vector.load %arg5[%c0_77, %c0_78] : memref<24x128xf32, #tpu.memory_space<vmem>>, vector<24x32xf32>
    tpu.vector_store %arg5[%c0_77, %c0_78], %120 {strides = array<i32>} : memref<24x128xf32, #tpu.memory_space<vmem>>, vector<24x32xf32>,
    %c0_79 = arith.constant 0 : index
    %c32_80 = arith.constant 32 : index
    %233 = vector.load %arg5[%c0_79, %c32_80] : memref<24x128xf32, #tpu.memory_space<vmem>>, vector<1x32xf32>
    tpu.vector_store %arg5[%c0_79, %c32_80], %14 {strides = array<i32>} : memref<24x128xf32, #tpu.memory_space<vmem>>, vector<1x32xf32>,
    %234 = vector.extract_strided_slice %158 {offsets = [0, 0], sizes = [8, 32], strides = [1, 1]} : vector<16x32xf32> to vector<8x32xf32>
    %c1 = arith.constant 1 : index
    %c32_81 = arith.constant 32 : index
    %235 = vector.load %arg5[%c1, %c32_81] : memref<24x128xf32, #tpu.memory_space<vmem>>, vector<8x32xf32>
    tpu.vector_store %arg5[%c1, %c32_81], %234 {strides = array<i32>} : memref<24x128xf32, #tpu.memory_space<vmem>>, vector<8x32xf32>,
    %c9 = arith.constant 9 : index
    %c32_82 = arith.constant 32 : index
    %236 = vector.load %arg5[%c9, %c32_82] : memref<24x128xf32, #tpu.memory_space<vmem>>, vector<1x32xf32>
    tpu.vector_store %arg5[%c9, %c32_82], %14 {strides = array<i32>} : memref<24x128xf32, #tpu.memory_space<vmem>>, vector<1x32xf32>,
    %237 = vector.extract_strided_slice %158 {offsets = [8, 0], sizes = [8, 32], strides = [1, 1]} : vector<16x32xf32> to vector<8x32xf32>
    %c10 = arith.constant 10 : index
    %c32_83 = arith.constant 32 : index
    %238 = vector.load %arg5[%c10, %c32_83] : memref<24x128xf32, #tpu.memory_space<vmem>>, vector<8x32xf32>
    tpu.vector_store %arg5[%c10, %c32_83], %237 {strides = array<i32>} : memref<24x128xf32, #tpu.memory_space<vmem>>, vector<8x32xf32>,
    %c0_84 = arith.constant 0 : index
    %c64 = arith.constant 64 : index
    %239 = vector.load %arg5[%c0_84, %c64] : memref<24x128xf32, #tpu.memory_space<vmem>>, vector<16x32xf32>
    tpu.vector_store %arg5[%c0_84, %c64], %210 {strides = array<i32>} : memref<24x128xf32, #tpu.memory_space<vmem>>, vector<16x32xf32>,
    %c0_85 = arith.constant 0 : index
    %c96_86 = arith.constant 96 : index
    %240 = vector.load %arg5[%c0_85, %c96_86] : memref<24x128xf32, #tpu.memory_space<vmem>>, vector<16x4xf32>
    tpu.vector_store %arg5[%c0_85, %c96_86], %229 {strides = array<i32>} : memref<24x128xf32, #tpu.memory_space<vmem>>, vector<16x4xf32>,
    return
  }
  func.func @transform_0(%arg0: i32) -> (i32, i32) {
    %c0_i32 = arith.constant 0 : i32
    %c0_i32_0 = arith.constant 0 : i32
    %c0_i32_1 = arith.constant 0 : i32
    return %c0_i32, %c0_i32_0 : i32, i32
  }
  func.func @transform_1(%arg0: i32) -> (i32, i32) {
    %c0_i32 = arith.constant 0 : i32
    %c0_i32_0 = arith.constant 0 : i32
    %c0_i32_1 = arith.constant 0 : i32
    return %c0_i32, %c0_i32_0 : i32, i32
  }
  func.func @transform_2(%arg0: i32) -> (i32, i32) {
    %c0_i32 = arith.constant 0 : i32
    %c0_i32_0 = arith.constant 0 : i32
    %c0_i32_1 = arith.constant 0 : i32
    return %c0_i32, %c0_i32_0 : i32, i32
  }
  func.func @transform_3(%arg0: i32) -> (i32, i32) {
    %c0_i32 = arith.constant 0 : i32
    %c0_i32_0 = arith.constant 0 : i32
    %c0_i32_1 = arith.constant 0 : i32
    return %c0_i32, %c0_i32_0 : i32, i32
  }
  func.func @transform_4(%arg0: i32) -> (i32, i32) {
    %c0_i32 = arith.constant 0 : i32
    %c0_i32_0 = arith.constant 0 : i32
    %c0_i32_1 = arith.constant 0 : i32
    return %c0_i32, %c0_i32_0 : i32, i32
  }
}

</mosaic_0001>

<llo_original>
// kernel: ets_encoder_layer.1
$region0: #{ets_encoder_layer.1}
  #allocation0 [shape = 'u32[]', space=smem, size = 0x4, offset = 0x4, fixed_abs, tag = 'smem constant byte address 0x4 - core index']
  #allocation1 [shape = 'u32[72,128]{1,0:T(1,128)}', space=vmem, size = 0x9000, scoped, tag = 'internal scratch']
  %s0 = inlined_call_operand.vmem [shape: f32[16,32], index: 0, kind: input, shape index: {}]
  %s1 = inlined_call_operand.vmem [shape: f32[16,4], index: 1, kind: input, shape index: {}]
  %s2 = inlined_call_operand.hbm [shape: f32[160,128], index: 2, kind: input, shape index: {}]
  %s3 = inlined_call_operand.hbm [shape: bf16[256,128], index: 3, kind: input, shape index: {}]
  %s4 = inlined_call_operand.vmem [shape: f32[24,128], index: 4, kind: output, shape index: {}]
  %s5 = sld [smem:[#allocation0]]
  $region34: #{ets_encoder_layer.1} parent=0
    _
  %s7 = ssub.s32 1, %s5
  %s8 = scalar_select 0, %s7, %s5
  $region1: #{ets_encoder_layer.1} parent=0
    #allocation2 [shape = 'u8[81920]{0}', space=vmem, size = 0x14000, scoped, tag = 'input window, operand 2, single buffered']
    #allocation3 [shape = 's32[1]{0}', space=sflag, size = 0x4, scoped, tag = 'scoped memory for ets_encoder_layer.1']
    #allocation4 [shape = 'u8[65536]{0}', space=vmem, size = 0x10000, scoped, tag = 'input window, operand 3, single buffered']
    #allocation5 [shape = 's32[1]{0}', space=sflag, size = 0x4, scoped, tag = 'scoped memory for ets_encoder_layer.1']
    %9 = vsyncpa [#allocation3], 0
    %10 = vsyncpa [#allocation5], 0
    // Predicated region
    $region2: #{ets_encoder_layer.1} parent=1 // pred_check
      _
    $region3: #{ets_encoder_layer.1} parent=1 // pred_check_branch
      %12 = sbr.rel (0) target = $region5
    $region4: #{ets_encoder_layer.1} parent=1 // pred_region
      _
    $region5: #{ets_encoder_layer.1} parent=1 // pred_fallthru
      _
    // Predicated region
    $region6: #{ets_encoder_layer.1} parent=1 // pred_check
      _
    $region7: #{ets_encoder_layer.1} parent=1 // pred_check_branch
      %14 = sbr.rel (0) target = $region9
    $region8: #{ets_encoder_layer.1} parent=1 // pred_region
      _
    $region9: #{ets_encoder_layer.1} parent=1 // pred_fallthru
      _
    // Predicated region
    $region10: #{ets_encoder_layer.1} parent=1 // pred_check
      _
    $region11: #{ets_encoder_layer.1} parent=1 // pred_check_branch
      %16 = sbr.rel (0) target = $region13
    $region12: #{ets_encoder_layer.1} parent=1 // pred_region
      %18 = vsyncadd [#allocation3], 0
      %s19 = sshll.u32 %s2, 4
      %s20 = int_to_ptr.hbm [resolvable:$true] %s19
      %s21 = sshll.u32 [#allocation2], 4
      %s22 = int_to_ptr.vmem [resolvable:$true] %s21
      %27 = dma.hbm_to_vmem [thread:$0]  %s20, 2560, %s22, [#allocation3], 128, 128, 8
    $region13: #{ets_encoder_layer.1} parent=1 // pred_fallthru
      _
    // Predicated region
    $region14: #{ets_encoder_layer.1} parent=1 // pred_check
      _
    $region15: #{ets_encoder_layer.1} parent=1 // pred_check_branch
      %29 = sbr.rel (0) target = $region17
    $region16: #{ets_encoder_layer.1} parent=1 // pred_region
      %31 = vsyncadd [#allocation5], 0
      %s32 = sshll.u32 %s3, 4
      %s33 = int_to_ptr.hbm [resolvable:$true] %s32
      %s34 = sshll.u32 [#allocation4], 4
      %s35 = int_to_ptr.vmem [resolvable:$true] %s34
      %40 = dma.hbm_to_vmem [thread:$0]  %s33, 2048, %s35, [#allocation5], 64, 64, 4
    $region17: #{ets_encoder_layer.1} parent=1 // pred_fallthru
      _
    // Predicated region
    $region18: #{ets_encoder_layer.1} parent=1 // pred_check
      _
    $region19: #{ets_encoder_layer.1} parent=1 // pred_check_branch
      %42 = sbr.rel (0) target = $region21
    $region20: #{ets_encoder_layer.1} parent=1 // pred_region
      %44 = dma.done [#allocation3], 2560
    $region21: #{ets_encoder_layer.1} parent=1 // pred_fallthru
      _
    // Predicated region
    $region22: #{ets_encoder_layer.1} parent=1 // pred_check
      _
    $region23: #{ets_encoder_layer.1} parent=1 // pred_check_branch
      %46 = sbr.rel (0) target = $region25
    $region24: #{ets_encoder_layer.1} parent=1 // pred_region
      %48 = dma.done [#allocation5], 2048
    $region25: #{ets_encoder_layer.1} parent=1 // pred_fallthru
      _
    %v50 = vld [vmem:[%s0] sm:$0xff]
    %v51 = vld [vmem:[%s0 + $0x8] sm:$0xff]
    %v52 = vld [vmem:[%s1] sm:$0xff]
    %v53 = vld [vmem:[%s1 + $0x8] sm:$0xff]
    %v54 = vld [vmem:[#allocation2] sm:$0xff]
    %v55 = vld [vmem:[#allocation2 + $0x8] sm:$0xff]
    %v56 = vld [vmem:[#allocation2 + $0x10] sm:$0xff]
    %v57 = vld [vmem:[#allocation2 + $0x18] sm:$0xff]
    %v58 = vld [vmem:[#allocation2 + $0x20] sm:$0xff]
    %v59 = vld [vmem:[#allocation2 + $0x28] sm:$0xff]
    %v60 = vld [vmem:[#allocation2 + $0x30] sm:$0xff]
    %v61 = vld [vmem:[#allocation2 + $0x38] sm:$0xff]
    %v62 = vld [vmem:[#allocation2 + $0x40] sm:$0xff]
    %v63 = vld [vmem:[#allocation2 + $0x48] sm:$0xff]
    %v64 = vld [vmem:[#allocation2 + $0x50] sm:$0xff]
    %v65 = vld [vmem:[#allocation2 + $0x58] sm:$0xff]
    %v66 = vld [vmem:[#allocation2 + $0x60] sm:$0xff]
    %v67 = vld [vmem:[#allocation2 + $0x68] sm:$0xff]
    %v68 = vld [vmem:[#allocation2 + $0x70] sm:$0xff]
    %v69 = vld [vmem:[#allocation2 + $0x78] sm:$0xff]
    %v70 = vld [vmem:[#allocation2 + $0x80] sm:$0xff]
    %v71 = vld [vmem:[#allocation2 + $0x88] sm:$0xff]
    %v72 = vld [vmem:[#allocation2 + $0x90] sm:$0xff]
    %v73 = vld [vmem:[#allocation2 + $0x98] sm:$0x1]
    %v74 = vld [vmem:[#allocation2 + $0x99] sm:$0x1]
    %v75 = vld [vmem:[#allocation2 + $0x9a] sm:$0x1]
    %v76 = vld [vmem:[#allocation2 + $0x9b] sm:$0x1]
    %v77 = vld [vmem:[#allocation2 + $0x9c] sm:$0x1]
    %v78 = vld [vmem:[#allocation2 + $0x9d] sm:$0x1]
    %v79 = vld [vmem:[#allocation2 + $0x9e] sm:$0x1]
    %v80 = vld [vmem:[#allocation2 + $0x9f] sm:$0x1]
    %v81 = vld [vmem:[#allocation4] sm:$0xf]
    %v82 = vld [vmem:[#allocation4 + $0x4] sm:$0xf]
    %v83 = vld [vmem:[#allocation4 + $0x8] sm:$0xf]
    %v84 = vld [vmem:[#allocation4 + $0xc] sm:$0xf]
    %v85 = vld [vmem:[#allocation4 + $0x10] sm:$0xf]
    %v86 = vld [vmem:[#allocation4 + $0x14] sm:$0xf]
    %v87 = vld [vmem:[#allocation4 + $0x18] sm:$0xf]
    %v88 = vld [vmem:[#allocation4 + $0x1c] sm:$0xf]
    %v89 = vld [vmem:[#allocation4 + $0x20] sm:$0xf]
    %v90 = vld [vmem:[#allocation4 + $0x24] sm:$0xf]
    %v91 = vld [vmem:[#allocation4 + $0x28] sm:$0xf]
    %v92 = vld [vmem:[#allocation4 + $0x2c] sm:$0xf]
    %v93 = vld [vmem:[#allocation4 + $0x30] sm:$0xf]
    %v94 = vld [vmem:[#allocation4 + $0x34] sm:$0xf]
    %v95 = vld [vmem:[#allocation4 + $0x38] sm:$0xf]
    %v96 = vld [vmem:[#allocation4 + $0x3c] sm:$0xf]
    %v97 = vld [vmem:[#allocation4 + $0x40] sm:$0xf]
    %v98 = vld [vmem:[#allocation4 + $0x44] sm:$0xf]
    %v99 = vld [vmem:[#allocation4 + $0x48] sm:$0xf]
    %v100 = vld [vmem:[#allocation4 + $0x4c] sm:$0xf]
    %v101 = vld [vmem:[#allocation4 + $0x50] sm:$0xf]
    %v102 = vld [vmem:[#allocation4 + $0x54] sm:$0xf]
    %v103 = vld [vmem:[#allocation4 + $0x58] sm:$0xf]
    %v104 = vld [vmem:[#allocation4 + $0x5c] sm:$0xf]
    %v105 = vld [vmem:[#allocation4 + $0x60] sm:$0xf]
    %v106 = vld [vmem:[#allocation4 + $0x64] sm:$0xf]
    %v107 = vld [vmem:[#allocation4 + $0x68] sm:$0xf]
    %v108 = vld [vmem:[#allocation4 + $0x6c] sm:$0xf]
    %v109 = vld [vmem:[#allocation4 + $0x70] sm:$0xf]
    %v110 = vld [vmem:[#allocation4 + $0x74] sm:$0xf]
    %v111 = vld [vmem:[#allocation4 + $0x78] sm:$0xf]
    %v112 = vld [vmem:[#allocation4 + $0x7c] sm:$0xf]
    %vm113 = vcmask 130048
    %v115 = vsel %vm113, %v68, 0
    %v118 = vsel %vm113, %v69, 0
    %120 = vmatpush.msra.mxu0 0.0
    %121 = vmatpush.msra.mxu0 0.0
    %122 = vmatpush.msra.mxu0 0.0
    %123 = vmatpush.msra.mxu0 0.0
    %124 = vmatpush.msra.mxu0 0.0
    %125 = vmatpush.msra.mxu0 0.0
    %126 = vmatpush.msra.mxu0 0.0
    %127 = vmatpush.msra.mxu0 0.0
    %128 = vmatpush.msra.mxu0 0.0
    %129 = vmatpush.msra.mxu0 0.0
    %130 = vmatpush.msra.mxu0 0.0
    %131 = vmatpush.msra.mxu0 0.0
    %132 = vmatpush.msra.mxu0 0.0
    %133 = vmatpush.msra.mxu0 0.0
    %134 = vmatpush.msra.mxu0 %v51
    %135 = vmatpush.msra.mxu0 %v50
    %136 = vmatmul.f32.gmra.mxu0 %v115
    %v137 = vpop.f32.mrf.mxu0
    %v138 = vadd.f32 0.0, %v137
    %139 = vmatmul.f32.gmra.mxu0 %v118
    %v140 = vpop.f32.mrf.mxu0
    %v141 = vadd.f32 0.0, %v140
    %142 = vdwg.mxu0
    %v143 = vmul.f32 %v138, %v138
    %v144 = vmul.f32 %v141, %v141
    %v145 = vadd.f32 %v143, %v144
    %v147 = vrot.slane %v145, 7
    %vm149 = vcmp.gt.f32.partialorder %v145, %v147
    %v150 = vsel %vm149, 1, 0
    %v151 = vcvt.s32.f32 %v150
    %v152 = vadd.f32 %v151, 0.0
    %v153 = vrot.slane %v145, 6
    %vm155 = vcmp.gt.f32.partialorder %v145, %v153
    %v156 = vsel %vm155, 1, 0
    %v157 = vcvt.s32.f32 %v156
    %v159 = vrot.slane %v157, 1
    %v161 = vadd.f32 %v152, %v159
    %vm162 = vcmp.lt.f32.partialorder %v161, 2.0
    %v163 = vsel %vm162, 1, 0
    %v164 = vcvt.s32.f32 %v163
    %v165 = vrot.slane %v145, 1
    %vm167 = vcmp.ge.f32.partialorder %v145, %v165
    %v168 = vsel %vm167, 1, 0
    %v169 = vcvt.s32.f32 %v168
    %v170 = vadd.f32 %v169, 0.0
    %v172 = vrot.slane %v151, 2
    %v174 = vadd.f32 %v170, %v172
    %vm175 = vcmp.lt.f32.partialorder %v174, 2.0
    %v176 = vsel %vm175, 1, 0
    %v177 = vcvt.s32.f32 %v176
    %v178 = vrot.slane %v145, 2
    %vm180 = vcmp.ge.f32.partialorder %v145, %v178
    %v181 = vsel %vm180, 1, 0
    %v182 = vcvt.s32.f32 %v181
    %v183 = vadd.f32 %v182, 0.0
    %v185 = vrot.slane %v169, 1
    %v187 = vadd.f32 %v183, %v185
    %vm188 = vcmp.lt.f32.partialorder %v187, 2.0
    %v189 = vsel %vm188, 1, 0
    %v190 = vcvt.s32.f32 %v189
    %v192 = vrot.slane %v164, 1
    %v195 = vrot.slane %v177, 7
    %v198 = vrot.slane %v190, 6
    %vm200 = vcmask 1040384
    %v201 = vsel %vm200, %v192, %v195
    %vm202 = vcmask 1041408
    %v203 = vsel %vm202, %v201, %v198
    %vm204 = vcmask 1042432
    %v205 = vsel %vm204, %v203, %v192
    %vm206 = vcmask 1043456
    %v207 = vsel %vm206, %v205, %v195
    %vm208 = vcmask 1044480
    %v209 = vsel %vm208, %v207, %v198
    %vm210 = vcmask 1045504
    %v211 = vsel %vm210, %v209, 0.0
    %v212 = vmul.f32 %v138, %v211
    %v213 = vmul.f32 %v141, %v211
    %v215 = vsel %vm113, %v70, 0
    %v218 = vsel %vm113, %v71, 0
    %v221 = vsel %vm113, %v72, 0
    %223 = vmatpush.msra.mxu0 0.0
    %224 = vmatpush.msra.mxu0 0.0
    %225 = vmatpush.msra.mxu0 0.0
    %226 = vmatpush.msra.mxu0 0.0
    %227 = vmatpush.msra.mxu0 0.0
    %228 = vmatpush.msra.mxu0 0.0
    %229 = vmatpush.msra.mxu0 0.0
    %230 = vmatpush.msra.mxu0 0.0
    %231 = vmatpush.msra.mxu0 0.0
    %232 = vmatpush.msra.mxu0 0.0
    %233 = vmatpush.msra.mxu0 0.0
    %234 = vmatpush.msra.mxu0 0.0
    %235 = vmatpush.msra.mxu0 0.0
    %236 = vmatpush.msra.mxu0 0.0
    %237 = vmatpush.msra.mxu0 %v213
    %238 = vmatpush.msra.mxu0 %v212
    %239 = vmatmul.f32.gmra.mxu0 %v215
    %v240 = vpop.f32.mrf.mxu0
    %v241 = vadd.f32 0.0, %v240
    %242 = vmatmul.f32.gmra.mxu0 %v218
    %v243 = vpop.f32.mrf.mxu0
    %v244 = vadd.f32 0.0, %v243
    %245 = vmatmul.f32.gmra.mxu0 %v221
    %v246 = vpop.f32.mrf.mxu0
    %v247 = vadd.f32 0.0, %v246
    %248 = vdwg.mxu0
    %249 = vrot.lane.b32.xlu0 %v68, 112
    %v250 = vpop.permute.xlu0 %249
    %251 = vrot.lane.b32.xlu0 %v69, 112
    %v252 = vpop.permute.xlu0 %251
    %v253 = vsel %vm113, %v250, 0
    %v255 = vsel %vm113, %v252, 0
    %257 = vmatpush.msra.mxu0 0.0
    %258 = vmatpush.msra.mxu0 0.0
    %259 = vmatpush.msra.mxu0 0.0
    %260 = vmatpush.msra.mxu0 0.0
    %261 = vmatpush.msra.mxu0 0.0
    %262 = vmatpush.msra.mxu0 0.0
    %263 = vmatpush.msra.mxu0 0.0
    %264 = vmatpush.msra.mxu0 0.0
    %265 = vmatpush.msra.mxu0 0.0
    %266 = vmatpush.msra.mxu0 0.0
    %267 = vmatpush.msra.mxu0 0.0
    %268 = vmatpush.msra.mxu0 0.0
    %269 = vmatpush.msra.mxu0 0.0
    %270 = vmatpush.msra.mxu0 0.0
    %271 = vmatpush.msra.mxu0 %v213
    %272 = vmatpush.msra.mxu0 %v212
    %273 = vmatmul.f32.gmra.mxu0 %v253
    %v274 = vpop.f32.mrf.mxu0
    %v275 = vadd.f32 0.0, %v274
    %276 = vmatmul.f32.gmra.mxu0 %v255
    %v277 = vpop.f32.mrf.mxu0
    %v278 = vadd.f32 0.0, %v277
    %279 = vdwg.mxu0
    %v280 = vsub.f32 %v50, %v275
    %v281 = vsub.f32 %v51, %v278
    %v282 = vlaneseq
    %v283 = vshrl.u32 %v282, 7
    %v284 = vadd.s32 %v283, 8
    %vm285 = vcmp.lt.s32.totalorder %v283, 0
    %v286 = vsub.s32 0, %v283
    %v287 = vsel %vm285, %v286, %v283
    %v288 = vshrl.u32 %v287, 3
    %v289 = vand.u32 %v287, 7
    %v290 = vsub.s32 0, %v289
    %v291 = vsel %vm285, %v290, %v289
    %vm292 = vcmp.lt.s32.totalorder %v284, 0
    %v293 = vsub.s32 0, %v284
    %v294 = vsel %vm292, %v293, %v284
    %v295 = vshrl.u32 %v294, 3
    %v296 = vand.u32 %v294, 7
    %v297 = vsub.s32 0, %v296
    %v298 = vsel %vm292, %v297, %v296
    %vm299 = vcmp.ne.s32.totalorder %v291, 0
    %vm300 = vcmp.ne.s32.totalorder %v298, 0
    %vm301 = vcmp.lt.s32.totalorder %v291, 0
    %vm302 = vcmp.lt.s32.totalorder %v298, 0
    %vm303 = vmand %vm301, %vm299
    %vm304 = vmand %vm302, %vm300
    %v305 = vadd.s32 %v291, 8
    %v306 = vadd.s32 %v298, 8
    %v307 = vsel %vm303, %v305, %v291
    %v308 = vsel %vm304, %v306, %v298
    %vm309 = vcmp.eq.s32.totalorder %v307, 0
    %vm310 = vcmp.eq.s32.totalorder %v308, 0
    %v311 = vpack.c.bf16 %v281, %v280
    %v312 = vperm.slane %v73, 0
    %v317 = vunpack.c.l.b16 %v101
    %v318 = vunpack.c.l.b16 %v102
    %v319 = vunpack.c.l.b16 %v103
    %v320 = vunpack.c.l.b16 %v104
    %v321 = vpack.c.b16 %v318, %v317
    %v322 = vpack.c.b16 %v320, %v319
    %vm325 = vcmask 261120
    %v327 = vsel %vm325, %v311, 0
    %329 = vmatpush.bf16.msra.mxu0 0
    %330 = vmatpush.bf16.msra.mxu0 0
    %331 = vmatpush.bf16.msra.mxu0 0
    %332 = vmatpush.bf16.msra.mxu0 0
    %333 = vmatpush.bf16.msra.mxu0 0
    %334 = vmatpush.bf16.msra.mxu0 0
    %335 = vmatpush.bf16.msra.mxu0 %v322
    %336 = vmatpush.bf16.msra.mxu0 %v321
    %337 = vmatmul.bf16.gmra.mxu0 %v327
    %v338 = vpop.f32.mrf.mxu0
    %v339 = vadd.f32 %v312, %v338
    %v340 = vpop.f32.mrf.mxu0
    %v341 = vadd.f32 %v312, %v340
    %342 = vdwg.mxu0
    %v343 = vrot.slane %v339, 7
    %v344 = vrot.slane %v341, 7
    %vm345 = vcmp.lt.s32.totalorder %v283, 1
    %v346 = vsel %vm345, %v343, %v344
    %v347 = vsel %vm345, %v344, %v343
    %v348 = vperm.slane %v74, 0
    %v349 = vsel %vm309, %v348, %v347
    %v350 = vsel %vm310, %v348, %v346
    %v351 = vsub.f32 %v339, %v349
    %v352 = vsub.f32 %v341, %v350
    %v353 = vmul.f32 %v351, %v58
    %v354 = vmul.f32 %v352, %v59
    %v355 = vmul.f32 %v351, %v60
    %v356 = vmul.f32 %v352, %v61
    %v357 = vmul.f32 %v351, %v62
    %v358 = vmul.f32 %v352, %v63
    %v359 = vmul.f32 %v351, %v64
    %v360 = vmul.f32 %v352, %v65
    %vm361 = vcmask 523264
    %v363 = vsel %vm361, %v56, 0
    %v366 = vsel %vm361, %v57, 0
    %368 = vmatpush.msra.mxu0 0.0
    %369 = vmatpush.msra.mxu0 0.0
    %370 = vmatpush.msra.mxu0 0.0
    %371 = vmatpush.msra.mxu0 0.0
    %372 = vmatpush.msra.mxu0 0.0
    %373 = vmatpush.msra.mxu0 0.0
    %374 = vmatpush.msra.mxu0 0.0
    %375 = vmatpush.msra.mxu0 0.0
    %376 = vmatpush.msra.mxu0 %v360
    %377 = vmatpush.msra.mxu0 %v359
    %378 = vmatpush.msra.mxu0 %v358
    %379 = vmatpush.msra.mxu0 %v357
    %380 = vmatpush.msra.mxu0 %v356
    %381 = vmatpush.msra.mxu0 %v355
    %382 = vmatpush.msra.mxu0 %v354
    %383 = vmatpush.msra.mxu0 %v353
    %384 = vmatmul.f32.gmra.mxu0 %v363
    %v385 = vpop.f32.mrf.mxu0
    %v386 = vadd.f32 %v66, %v385
    %387 = vmatmul.f32.gmra.mxu0 %v366
    %v388 = vpop.f32.mrf.mxu0
    %v389 = vadd.f32 %v67, %v388
    %390 = vdwg.mxu0
    %v391 = vpack.c.bf16 %v389, %v386
    %v392 = vperm.slane %v75, 0
    %393 = vrot.lane.b32.xlu0 %v321, 96
    %v394 = vpop.permute.xlu0 %393
    %395 = vrot.lane.b32.xlu0 %v322, 96
    %v396 = vpop.permute.xlu0 %395
    %v400 = vsel %vm325, %v391, 0
    %402 = vmatpush.bf16.msra.mxu0 0
    %403 = vmatpush.bf16.msra.mxu0 0
    %404 = vmatpush.bf16.msra.mxu0 0
    %405 = vmatpush.bf16.msra.mxu0 0
    %406 = vmatpush.bf16.msra.mxu0 0
    %407 = vmatpush.bf16.msra.mxu0 0
    %408 = vmatpush.bf16.msra.mxu0 %v396
    %409 = vmatpush.bf16.msra.mxu0 %v394
    %410 = vmatmul.bf16.gmra.mxu0 %v400
    %v411 = vpop.f32.mrf.mxu0
    %v412 = vadd.f32 %v392, %v411
    %v413 = vpop.f32.mrf.mxu0
    %v414 = vadd.f32 %v392, %v413
    %415 = vdwg.mxu0
    %v416 = vsub.f32 %v280, %v412
    %v417 = vsub.f32 %v281, %v414
    %v418 = vsel %vm325, %v416, 0.0
    %419 = vadd.xlane.f32.xlu0 %v418
    %v420 = vpop.xlane.xlu0 %419
    %v421 = vsel %vm325, %v417, 0.0
    %422 = vadd.xlane.f32.xlu0 %v421
    %v423 = vpop.xlane.xlu0 %422
    %v424 = vrcp.pop 32.0
    %v425 = vmul.f32 32.0, %v424
    %v426 = vsub.f32 1.0, %v425
    %v427 = vmul.f32 %v424, %v426
    %v428 = vadd.f32 %v424, %v427
    %vm429 = vweird.f32 %v424
    %v430 = vsel %vm429, %v424, %v428
    %v431 = vmul.f32 %v420, %v430
    %v432 = vmul.f32 %v423, %v430
    %v433 = vsub.f32 %v416, %v431
    %v434 = vsub.f32 %v417, %v432
    %v435 = vmul.f32 %v433, %v433
    %v436 = vmul.f32 %v434, %v434
    %v437 = vsel %vm325, %v435, 0.0
    %438 = vadd.xlane.f32.xlu0 %v437
    %v439 = vpop.xlane.xlu0 %438
    %v440 = vsel %vm325, %v436, 0.0
    %441 = vadd.xlane.f32.xlu0 %v440
    %v442 = vpop.xlane.xlu0 %441
    %v443 = vmul.f32 %v439, %v430
    %v444 = vmul.f32 %v442, %v430
    %v445 = vadd.f32 %v443, 1e-05
    %v446 = vadd.f32 %v444, 1e-05
    %v447 = vrsqrt.pop %v445
    %v448 = vmul.f32 %v447, %v445
    %v449 = vmul.f32 %v448, %v447
    %v450 = vmul.f32 0.5, %v449
    %v451 = vsub.f32 1.5, %v450
    %v452 = vmul.f32 %v447, %v451
    %vm453 = vweird.f32 %v445
    %vm454 = vweird.f32 %v447
    %vm455 = vmor %vm453, %vm454
    %v456 = vsel %vm455, %v447, %v452
    %v457 = vrsqrt.pop %v446
    %v458 = vmul.f32 %v457, %v446
    %v459 = vmul.f32 %v458, %v457
    %v460 = vmul.f32 0.5, %v459
    %v461 = vsub.f32 1.5, %v460
    %v462 = vmul.f32 %v457, %v461
    %vm463 = vweird.f32 %v446
    %vm464 = vweird.f32 %v457
    %vm465 = vmor %vm463, %vm464
    %v466 = vsel %vm465, %v457, %v462
    %v467 = vmul.f32 %v433, %v456
    %v468 = vmul.f32 %v434, %v466
    %v469 = vperm.slane %v77, 0
    %v470 = vmul.f32 %v467, %v469
    %v471 = vmul.f32 %v468, %v469
    %v472 = vperm.slane %v78, 0
    %v473 = vadd.f32 %v470, %v472
    %v474 = vadd.f32 %v471, %v472
    %v475 = vpack.c.bf16 %v474, %v473
    %v480 = vunpack.c.l.b16 %v81
    %v481 = vunpack.c.l.b16 %v82
    %v482 = vunpack.c.l.b16 %v83
    %v483 = vunpack.c.l.b16 %v84
    %v484 = vpack.c.b16 %v481, %v480
    %v485 = vpack.c.b16 %v483, %v482
    %v489 = vsel %vm325, %v475, 0
    %491 = vmatpush.bf16.msra.mxu0 0
    %492 = vmatpush.bf16.msra.mxu0 0
    %493 = vmatpush.bf16.msra.mxu0 0
    %494 = vmatpush.bf16.msra.mxu0 0
    %495 = vmatpush.bf16.msra.mxu0 0
    %496 = vmatpush.bf16.msra.mxu0 0
    %497 = vmatpush.bf16.msra.mxu0 %v485
    %498 = vmatpush.bf16.msra.mxu0 %v484
    %499 = vmatmul.bf16.gmra.mxu0 %v489
    %v500 = vpop.f32.mrf.mxu0
    %v501 = vadd.f32 0.0, %v500
    %v502 = vpop.f32.mrf.mxu0
    %v503 = vadd.f32 0.0, %v502
    %504 = vdwg.mxu0
    %v505 = vsub.f32 0.0, %v501
    %v506 = vsub.f32 0.0, %v503
    %v507 = vmul.f32 %v505, 1.442695
    %v508 = vpow.pop %v507
    %v509 = vmul.f32 %v506, 1.442695
    %v510 = vpow.pop %v509
    %v511 = vadd.f32 %v508, 1.0
    %v512 = vadd.f32 %v510, 1.0
    %v513 = vrcp.pop %v511
    %v514 = vrcp.pop %v512
    %v515 = vpack.c.bf16 %v514, %v513
    %v532 = vunpack.c.l.b16 %v85
    %v533 = vunpack.c.l.b16 %v86
    %v534 = vunpack.c.l.b16 %v87
    %v535 = vunpack.c.l.b16 %v88
    %v536 = vunpack.c.l.b16 %v89
    %v537 = vunpack.c.l.b16 %v90
    %v538 = vunpack.c.l.b16 %v91
    %v539 = vunpack.c.l.b16 %v92
    %v540 = vunpack.c.l.b16 %v93
    %v541 = vunpack.c.l.b16 %v94
    %v542 = vunpack.c.l.b16 %v95
    %v543 = vunpack.c.l.b16 %v96
    %v544 = vunpack.c.l.b16 %v97
    %v545 = vunpack.c.l.b16 %v98
    %v546 = vunpack.c.l.b16 %v99
    %v547 = vunpack.c.l.b16 %v100
    %v548 = vpack.c.b16 %v533, %v532
    %v549 = vpack.c.b16 %v535, %v534
    %v550 = vpack.c.b16 %v537, %v536
    %v551 = vpack.c.b16 %v539, %v538
    %v552 = vpack.c.b16 %v541, %v540
    %v553 = vpack.c.b16 %v543, %v542
    %v554 = vpack.c.b16 %v545, %v544
    %v555 = vpack.c.b16 %v547, %v546
    %564 = vmatpush.bf16.msra.mxu0 %v555
    %565 = vmatpush.bf16.msra.mxu0 %v554
    %566 = vmatpush.bf16.msra.mxu0 %v553
    %567 = vmatpush.bf16.msra.mxu0 %v552
    %568 = vmatpush.bf16.msra.mxu0 %v551
    %569 = vmatpush.bf16.msra.mxu0 %v550
    %570 = vmatpush.bf16.msra.mxu0 %v549
    %571 = vmatpush.bf16.msra.mxu0 %v548
    %572 = vmatmul.bf16.gmra.mxu0 %v515
    %v573 = vpop.f32.mrf.mxu0
    %v574 = vadd.f32 0.0, %v573
    %v575 = vpop.f32.mrf.mxu0
    %v576 = vadd.f32 0.0, %v575
    %577 = vdwg.mxu0
    %v578 = vadd.f32 %v473, %v574
    %v579 = vadd.f32 %v474, %v576
    %v580 = vsel %vm325, %v578, 0.0
    %581 = vadd.xlane.f32.xlu0 %v580
    %v582 = vpop.xlane.xlu0 %581
    %v583 = vsel %vm325, %v579, 0.0
    %584 = vadd.xlane.f32.xlu0 %v583
    %v585 = vpop.xlane.xlu0 %584
    %v586 = vmul.f32 %v582, %v430
    %v587 = vmul.f32 %v585, %v430
    %v588 = vsub.f32 %v578, %v586
    %v589 = vsub.f32 %v579, %v587
    %v590 = vmul.f32 %v588, %v588
    %v591 = vmul.f32 %v589, %v589
    %v592 = vsel %vm325, %v590, 0.0
    %593 = vadd.xlane.f32.xlu0 %v592
    %v594 = vpop.xlane.xlu0 %593
    %v595 = vsel %vm325, %v591, 0.0
    %596 = vadd.xlane.f32.xlu0 %v595
    %v597 = vpop.xlane.xlu0 %596
    %v598 = vmul.f32 %v594, %v430
    %v599 = vmul.f32 %v597, %v430
    %v600 = vadd.f32 %v598, 1e-05
    %v601 = vadd.f32 %v599, 1e-05
    %v602 = vrsqrt.pop %v600
    %v603 = vmul.f32 %v602, %v600
    %v604 = vmul.f32 %v603, %v602
    %v605 = vmul.f32 0.5, %v604
    %v606 = vsub.f32 1.5, %v605
    %v607 = vmul.f32 %v602, %v606
    %vm608 = vweird.f32 %v600
    %vm609 = vweird.f32 %v602
    %vm610 = vmor %vm608, %vm609
    %v611 = vsel %vm610, %v602, %v607
    %v612 = vrsqrt.pop %v601
    %v613 = vmul.f32 %v612, %v601
    %v614 = vmul.f32 %v613, %v612
    %v615 = vmul.f32 0.5, %v614
    %v616 = vsub.f32 1.5, %v615
    %v617 = vmul.f32 %v612, %v616
    %vm618 = vweird.f32 %v601
    %vm619 = vweird.f32 %v612
    %vm620 = vmor %vm618, %vm619
    %v621 = vsel %vm620, %v612, %v617
    %v622 = vmul.f32 %v588, %v611
    %v623 = vmul.f32 %v589, %v621
    %v624 = vperm.slane %v79, 0
    %v625 = vmul.f32 %v622, %v624
    %v626 = vmul.f32 %v623, %v624
    %v627 = vperm.slane %v80, 0
    %v628 = vadd.f32 %v625, %v627
    %v629 = vadd.f32 %v626, %v627
    %v630 = vrot.slane %v412, 7
    %v631 = vrot.slane %v414, 7
    %v632 = vsel %vm345, %v630, %v631
    %v633 = vsel %vm345, %v631, %v630
    %v634 = vperm.slane %v76, 0
    %v635 = vsel %vm309, %v634, %v633
    %v636 = vsel %vm310, %v634, %v632
    %639 = vrot.lane.b32.xlu0 %v275, 32
    %v640 = vpop.permute.xlu0 %639
    %641 = vrot.lane.b32.xlu0 %v278, 32
    %v642 = vpop.permute.xlu0 %641
    %v645 = vsel %vm325, %v635, %v640
    %v646 = vsel %vm325, %v636, %v642
    %v647 = vpack.c.bf16 %v646, %v645
    %v656 = vunpack.c.l.b16 %v105
    %v657 = vunpack.c.l.b16 %v106
    %v658 = vunpack.c.l.b16 %v107
    %v659 = vunpack.c.l.b16 %v108
    %v660 = vunpack.c.l.b16 %v109
    %v661 = vunpack.c.l.b16 %v110
    %v662 = vunpack.c.l.b16 %v111
    %v663 = vunpack.c.l.b16 %v112
    %v664 = vpack.c.b16 %v657, %v656
    %v665 = vpack.c.b16 %v659, %v658
    %v666 = vpack.c.b16 %v661, %v660
    %v667 = vpack.c.b16 %v663, %v662
    %673 = vrot.lane.b32.xlu0 %v312, 96
    %v674 = vpop.permute.xlu0 %673
    %v677 = vsel %vm361, %v647, 0
    %679 = vmatpush.bf16.msra.mxu0 0
    %680 = vmatpush.bf16.msra.mxu0 0
    %681 = vmatpush.bf16.msra.mxu0 0
    %682 = vmatpush.bf16.msra.mxu0 0
    %683 = vmatpush.bf16.msra.mxu0 %v667
    %684 = vmatpush.bf16.msra.mxu0 %v666
    %685 = vmatpush.bf16.msra.mxu0 %v665
    %686 = vmatpush.bf16.msra.mxu0 %v664
    %687 = vmatmul.bf16.gmra.mxu0 %v677
    %v688 = vpop.f32.mrf.mxu0
    %v689 = vadd.f32 %v674, %v688
    %v690 = vpop.f32.mrf.mxu0
    %v691 = vadd.f32 %v674, %v690
    %692 = vdwg.mxu0
    %695 = vrot.lane.b32.xlu0 %v689, 124
    %v696 = vpop.permute.xlu0 %695
    %697 = vrot.lane.b32.xlu0 %v691, 124
    %v698 = vpop.permute.xlu0 %697
    %v701 = vsub.f32 %v52, %v696
    %v702 = vsub.f32 %v53, %v698
    %711 = vrot.lane.b32.xlu0 %v58, 96
    %v712 = vpop.permute.xlu0 %711
    %713 = vrot.lane.b32.xlu0 %v59, 96
    %v714 = vpop.permute.xlu0 %713
    %715 = vrot.lane.b32.xlu0 %v60, 96
    %v716 = vpop.permute.xlu0 %715
    %717 = vrot.lane.b32.xlu0 %v61, 96
    %v718 = vpop.permute.xlu0 %717
    %719 = vrot.lane.b32.xlu0 %v62, 96
    %v720 = vpop.permute.xlu0 %719
    %721 = vrot.lane.b32.xlu0 %v63, 96
    %v722 = vpop.permute.xlu0 %721
    %723 = vrot.lane.b32.xlu0 %v64, 96
    %v724 = vpop.permute.xlu0 %723
    %725 = vrot.lane.b32.xlu0 %v65, 96
    %v726 = vpop.permute.xlu0 %725
    %v735 = vmul.f32 %v701, %v712
    %v736 = vmul.f32 %v702, %v714
    %v737 = vmul.f32 %v701, %v716
    %v738 = vmul.f32 %v702, %v718
    %v739 = vmul.f32 %v701, %v720
    %v740 = vmul.f32 %v702, %v722
    %v741 = vmul.f32 %v701, %v724
    %v742 = vmul.f32 %v702, %v726
    %v743 = vmul.f32 %v689, %v712
    %v744 = vmul.f32 %v691, %v714
    %v745 = vmul.f32 %v689, %v716
    %v746 = vmul.f32 %v691, %v718
    %v747 = vmul.f32 %v689, %v720
    %v748 = vmul.f32 %v691, %v722
    %v749 = vmul.f32 %v689, %v724
    %v750 = vmul.f32 %v691, %v726
    %753 = vrot.lane.b32.xlu0 %v66, 96
    %v754 = vpop.permute.xlu0 %753
    %755 = vrot.lane.b32.xlu0 %v67, 96
    %v756 = vpop.permute.xlu0 %755
    %759 = vmatpush.msra.mxu0 %v750
    %760 = vmatpush.msra.mxu0 %v749
    %761 = vmatpush.msra.mxu0 %v748
    %762 = vmatpush.msra.mxu0 %v747
    %763 = vmatpush.msra.mxu0 %v746
    %764 = vmatpush.msra.mxu0 %v745
    %765 = vmatpush.msra.mxu0 %v744
    %766 = vmatpush.msra.mxu0 %v743
    %767 = vmatpush.msra.mxu0 %v742
    %768 = vmatpush.msra.mxu0 %v741
    %769 = vmatpush.msra.mxu0 %v740
    %770 = vmatpush.msra.mxu0 %v739
    %771 = vmatpush.msra.mxu0 %v738
    %772 = vmatpush.msra.mxu0 %v737
    %773 = vmatpush.msra.mxu0 %v736
    %774 = vmatpush.msra.mxu0 %v735
    %775 = vmatmul.f32.gmra.mxu0 %v54
    %v776 = vpop.f32.mrf.mxu0
    %v777 = vadd.f32 %v754, %v776
    %778 = vmatmul.f32.gmra.mxu0 %v55
    %v779 = vpop.f32.mrf.mxu0
    %v780 = vadd.f32 %v756, %v779
    %781 = vdwg.mxu0
    %782 = vst [vmem:[%s4] sm:$0xff] 0.0
    %783 = vst [vmem:[%s4 + $0x8] sm:$0xff] 0.0
    %784 = vst [vmem:[%s4 + $0x10] sm:$0xff] 0.0
    %785 = vst.msk [vmem:[%s4] sm:$0xff] %vm325, %v241
    %786 = vst.msk [vmem:[%s4 + $0x8] sm:$0xff] %vm325, %v244
    %787 = vst.msk [vmem:[%s4 + $0x10] sm:$0xff] %vm325, %v247
    %789 = vrot.lane.b32.xlu0 %v76, 32
    %v790 = vpop.permute.xlu0 %789
    %vm792 = vcmask 516352
    %793 = vst.msk [vmem:[%s4] sm:$0x1] %vm792, %v790
    %795 = vrot.lane.b32.xlu0 %v412, 32
    %v796 = vpop.permute.xlu0 %795
    %vm798 = vcmask 523520
    %799 = vst.msk [vmem:[%s4 + $0x1] sm:$0xff] %vm798, %v796
    %800 = vst.msk [vmem:[%s4 + $0x9] sm:$0x1] %vm792, %v790
    %802 = vrot.lane.b32.xlu0 %v414, 32
    %v803 = vpop.permute.xlu0 %802
    %805 = vst.msk [vmem:[%s4 + $0xa] sm:$0xff] %vm798, %v803
    %808 = vrot.lane.b32.xlu0 %v628, 64
    %v809 = vpop.permute.xlu0 %808
    %810 = vrot.lane.b32.xlu0 %v629, 64
    %v811 = vpop.permute.xlu0 %810
    %vm814 = vcmask 785920
    %815 = vst.msk [vmem:[%s4] sm:$0xff] %vm814, %v809
    %816 = vst.msk [vmem:[%s4 + $0x8] sm:$0xff] %vm814, %v811
    %819 = vrot.lane.b32.xlu0 %v777, 96
    %v820 = vpop.permute.xlu0 %819
    %821 = vrot.lane.b32.xlu0 %v780, 96
    %v822 = vpop.permute.xlu0 %821
    %vm825 = vcmask 818944
    %826 = vst.msk [vmem:[%s4] sm:$0xff] %vm825, %v820
    %827 = vst.msk [vmem:[%s4 + $0x8] sm:$0xff] %vm825, %v822
    // Predicated region
    $region26: #{ets_encoder_layer.1} parent=1 // pred_check
      _
    $region27: #{ets_encoder_layer.1} parent=1 // pred_check_branch
      %829 = sbr.rel (0) target = $region29
    $region28: #{ets_encoder_layer.1} parent=1 // pred_region
      _
    $region29: #{ets_encoder_layer.1} parent=1 // pred_fallthru
      _
    // Predicated region
    $region30: #{ets_encoder_layer.1} parent=1 // pred_check
      _
    $region31: #{ets_encoder_layer.1} parent=1 // pred_check_branch
      %831 = sbr.rel (0) target = $region33
    $region32: #{ets_encoder_layer.1} parent=1 // pred_region
      _
    $region33: #{ets_encoder_layer.1} parent=1 // pred_fallthru
      _
    %832 = vsyncpa [#allocation3], 1
    %833 = vsyncpa [#allocation5], 1

</llo_original>
